<compile_context>
chip_gen: v7x
topology: tpu7x:2x2x1
jax: 0.10.0
libtpu: 0.0.40
codegen_flags: <defaults>
</compile_context>

<pallas_src>
import jax
import jax.numpy as jnp
from jax import lax
from jax.experimental import pallas as pl
from jax.experimental.pallas import tpu as pltpu

EPS = 1e-06
NEG_SLOPE = 0.2
_HIGHEST = lax.Precision.HIGHEST


def _cl_lrelu_kernel(x_ref, j_ref, abct_ref, wt_ref, o_ref):
    # x_ref, j_ref : [TB, 3, C, E]  (3-vector component axis hoisted out of the lane dim)
    # abct_ref     : [3E, F] = [A^T ; B^T ; C^T]
    # wt_ref       : [F, F]  = W^T (map_to_dir weight, transposed)
    # o_ref        : [TB, 3, C, F]
    TB, _, C, E = x_ref.shape
    F = wt_ref.shape[0]

    x = x_ref[...]
    j = j_ref[...]
    xx, xy, xz = x[:, 0], x[:, 1], x[:, 2]        # each [TB, C, E]
    jx, jy, jz = j[:, 0], j[:, 1], j[:, 2]

    # ---- get_basis: normalized J (one shared reciprocal per denominator) ----
    r_j = 1.0 / (jnp.sqrt(jx * jx + jy * jy + jz * jz) + EPS)
    njx = jx * r_j
    njy = jy * r_j
    njz = jz * r_j

    # ---- get_on_vector: U orthogonal to J, then normalize ----
    uz = -(njx * njx + njy * njy) / (njz + EPS)
    r_u = 1.0 / (jnp.sqrt(njx * njx + njy * njy + uz * uz) + EPS)
    nux = njx * r_u
    nuy = njy * r_u
    nuz = uz * r_u

    # ---- V = cross(U, J) ----
    vx = nuy * njz - nuz * njy
    vy = nuz * njx - nux * njz
    vz = nux * njy - nuy * njx

    # R rows are (U, V, J); rtx_i = sum_k R[k, i] * X[k]   (i.e. R^T X)
    rtx0 = nux * xx + vx * xy + njx * xz
    rtx1 = nuy * xx + vy * xy + njy * xz
    rtx2 = nuz * xx + vz * xy + njz * xz

    # a_term[k] = R[k,0]*rtx0 + R[k,1]*rtx1
    # b_term[k] = R[k,1]*rtx0 - R[k,0]*rtx1
    # c_term[k] = R[k,2]*rtx2
    a_s = jnp.stack([nux * rtx0 + nuy * rtx1,
                     vx * rtx0 + vy * rtx1,
                     njx * rtx0 + njy * rtx1], axis=1)          # [TB, 3, C, E]
    b_s = jnp.stack([nuy * rtx0 - nux * rtx1,
                     vy * rtx0 - vx * rtx1,
                     njy * rtx0 - njx * rtx1], axis=1)
    c_s = jnp.stack([nuz * rtx2, vz * rtx2, njz * rtx2], axis=1)

    # ---- Fused ComplexLinear: one [TB*3*C, 3E] x [3E, F] MXU dot ----
    lhs = jnp.concatenate([a_s, b_s, c_s], axis=-1).reshape(TB * 3 * C, 3 * E)
    y = jnp.dot(lhs, abct_ref[...], preferred_element_type=jnp.float32,
                precision=_HIGHEST)                               # [TB*3*C, F]

    # ---- Fused map_to_dir: one [TB*3*C, F] x [F, F] MXU dot ----
    d = jnp.dot(y, wt_ref[...], preferred_element_type=jnp.float32,
                precision=_HIGHEST)                               # [TB*3*C, F]

    y4 = y.reshape(TB, 3, C, F)
    d4 = d.reshape(TB, 3, C, F)

    # ---- VNLeakyReLU:  out = y - (1-ns) * [dotprod < 0] * (dotprod / (|d|^2+eps)) * d ----
    dotprod = jnp.sum(y4 * d4, axis=1, keepdims=True)             # [TB, 1, C, F]
    d_norm_sq = jnp.sum(d4 * d4, axis=1, keepdims=True)
    scale = dotprod / (d_norm_sq + EPS)                           # exact divide (correctness)
    coef = (1.0 - NEG_SLOPE) * jnp.where(dotprod >= 0.0, 0.0, scale)
    # TODO(synk): F=16 keeps the output stores lane-masked; in production F should be
    # >=128 (or the consumer should take a lane-dense [.., C*F] slab) for unmasked vst.
    o_ref[...] = y4 - coef * d4


def complex_linear_and_leaky_relu(X, J, A, Bw, Cw, W, *, block_b=None):
    """X, J: [B, C, E, 3] (torch layout). Returns [B, F, 3, C] (torch output layout)."""
    Bsz, C, E, _ = X.shape
    F_out = A.shape[0]

    # Batch tile: fold several batch elements per grid step (amortizes per-step
    # overhead, grows matmul M) while keeping >= 2 grid steps so both v7x TCs get work.
    if block_b is None:
        divisors = [t for t in range(1, Bsz + 1) if Bsz % t == 0 and Bsz // t >= 2]
        block_b = max(divisors) if divisors else Bsz

    # Layout plumbing (done once, outside the kernel loop). In a real pipeline the
    # producer/consumer should hold X/J as [B, 3, C, E] and the output as [B, 3, C, F]
    # to avoid these extra HBM passes entirely.
    Xk = jnp.transpose(X, (0, 3, 1, 2)).astype(jnp.float32)       # [B, 3, C, E]
    Jk = jnp.transpose(J, (0, 3, 1, 2)).astype(jnp.float32)
    ABCt = jnp.concatenate(
        [jnp.transpose(A), jnp.transpose(Bw), jnp.transpose(Cw)], axis=0
    ).astype(jnp.float32)                                         # [3E, F]
    Wt = jnp.transpose(W).astype(jnp.float32)                     # [F, F]

    flops = 2 * Bsz * 3 * C * (3 * E) * F_out + 2 * Bsz * 3 * C * F_out * F_out
    bytes_accessed = 4 * (2 * Bsz * 3 * C * E + 3 * E * F_out + F_out * F_out
                          + Bsz * 3 * C * F_out)
    cost = pl.CostEstimate(flops=flops,
                           transcendentals=2 * Bsz * C * E,
                           bytes_accessed=bytes_accessed)

    out = pl.pallas_call(
        _cl_lrelu_kernel,
        out_shape=jax.ShapeDtypeStruct((Bsz, 3, C, F_out), jnp.float32),
        grid=(Bsz // block_b,),
        in_specs=[
            pl.BlockSpec((block_b, 3, C, E), lambda b: (b, 0, 0, 0)),
            pl.BlockSpec((block_b, 3, C, E), lambda b: (b, 0, 0, 0)),
            pl.BlockSpec((3 * E, F_out), lambda b: (0, 0)),
            pl.BlockSpec((F_out, F_out), lambda b: (0, 0)),
        ],
        out_specs=pl.BlockSpec((block_b, 3, C, F_out), lambda b: (b, 0, 0, 0)),
        compiler_params=pltpu.CompilerParams(dimension_semantics=("parallel",)),
        cost_estimate=cost,
    )(Xk, Jk, ABCt, Wt)

    # [B, 3, C, F] -> [B, F, 3, C] to match the torch module's output layout.
    return jnp.transpose(out, (0, 3, 1, 2))


def _reference(X, J, A, Bw, Cw, W, ns=NEG_SLOPE):
    """Pure-JAX faithful port of the torch forward (for correctness check)."""
    Jn = jnp.linalg.norm(J, axis=-1)
    nJ = J / (Jn[..., None] + EPS)
    Uz = -(nJ[..., 0] ** 2 + nJ[..., 1] ** 2) / (nJ[..., 2] + EPS)
    U = jnp.concatenate([nJ[..., :2], Uz[..., None]], axis=-1)
    nU = U / (jnp.linalg.norm(U, axis=-1)[..., None] + EPS)
    nV = jnp.cross(nU, nJ, axis=-1)
    R = jnp.stack([nU, nV, nJ], axis=-2)                      # [B,C,E,3(row k),3(col i)]
    rtx = jnp.einsum('bceki,bcek->bcei', R, X, precision=_HIGHEST)   # [B,C,E,3]
    a_term = R[..., :, 0] * rtx[..., 0:1] + R[..., :, 1] * rtx[..., 1:2]
    b_term = R[..., :, 1] * rtx[..., 0:1] - R[..., :, 0] * rtx[..., 1:2]
    c_term = R[..., :, 2] * rtx[..., 2:3]
    Y = (jnp.einsum('fe,bcek->bcfk', A, a_term, precision=_HIGHEST)
         + jnp.einsum('fe,bcek->bcfk', Bw, b_term, precision=_HIGHEST)
         + jnp.einsum('fe,bcek->bcfk', Cw, c_term, precision=_HIGHEST))  # [B,C,F,3]
    x = jnp.transpose(Y, (0, 2, 3, 1))                         # [B,F,3,C]
    d = jnp.einsum('fg,bgic->bfic', W, x, precision=_HIGHEST)
    dotprod = (x * d).sum(2, keepdims=True)
    mask = (dotprod >= 0).astype(jnp.float32)
    d_norm_sq = (d * d).sum(2, keepdims=True)
    return ns * x + (1 - ns) * (mask * x + (1 - mask) * (x - dotprod / (d_norm_sq + EPS) * d))


if __name__ == "__main__":
    key = jax.random.PRNGKey(0)
    kx, kj, ka, kb, kc, kw = jax.random.split(key, 6)

    Bsz, C, E, F_out = 8, 8, 8, 16                 # batch, points, in_channels, out_channels
    X = jax.random.normal(kx, (Bsz, C, E, 3), jnp.float32)
    J = jax.random.normal(kj, (Bsz, C, E, 3), jnp.float32)

    # Deterministic parameter init (shapes from ComplexLinear / VNLeakyReLU __init__)
    A = jax.random.normal(ka, (F_out, E), jnp.float32)
    Bw = jax.random.normal(kb, (F_out, E), jnp.float32)
    Cw = jax.random.normal(kc, (F_out, E), jnp.float32)
    W = jax.random.normal(kw, (F_out, F_out), jnp.float32) * 0.1   # map_to_dir weight

    fn = jax.jit(complex_linear_and_leaky_relu)
    out = jax.block_until_ready(fn(X, J, A, Bw, Cw, W))
    ref = _reference(X, J, A, Bw, Cw, W)

    assert out.shape == (Bsz, F_out, 3, C), out.shape
    max_err = float(jnp.max(jnp.abs(out - ref)))
    # All math is f32 with HIGHEST-precision matmuls on both sides; remaining delta is
    # f32 roundoff / reassociation only.
    assert jnp.allclose(out, ref, atol=2e-3, rtol=2e-3), max_err
    print("KERNEL_OK")
</pallas_src>

<mosaic_0001>
module attributes {stable_mosaic.version = 11 : i64} {
  func.func @_cl_lrelu_kernel(%arg0: i32, %arg1: memref<4x3x8x8xf32, #tpu.memory_space<vmem>>, %arg2: memref<4x3x8x8xf32, #tpu.memory_space<vmem>>, %arg3: memref<24x16xf32, #tpu.memory_space<vmem>>, %arg4: memref<16x16xf32, #tpu.memory_space<vmem>>, %arg5: memref<4x3x8x16xf32, #tpu.memory_space<vmem>>) attributes {dimension_semantics = [#tpu.dimension_semantics<parallel>], iteration_bounds = array<i64: 2>, scalar_prefetch = 0 : i64, scratch_operands = 0 : i64, tpu.core_type = #tpu.core_type<tc>, window_params = [{transform_indices = @transform_0, window_bounds = array<i64: 4, 3, 8, 8>}, {transform_indices = @transform_1, window_bounds = array<i64: 4, 3, 8, 8>}, {pipeline_mode = #tpu.pipeline_mode<synchronous>, transform_indices = @transform_2, window_bounds = array<i64: 24, 16>}, {pipeline_mode = #tpu.pipeline_mode<synchronous>, transform_indices = @transform_3, window_bounds = array<i64: 16, 16>}, {transform_indices = @transform_4, window_bounds = array<i64: 4, 3, 8, 16>}]} {
    %c0 = arith.constant 0 : index
    %c0_0 = arith.constant 0 : index
    %c0_1 = arith.constant 0 : index
    %c0_2 = arith.constant 0 : index
    %0 = vector.load %arg1[%c0, %c0_0, %c0_1, %c0_2] : memref<4x3x8x8xf32, #tpu.memory_space<vmem>>, vector<4x3x8x8xf32>
    %c0_3 = arith.constant 0 : index
    %c0_4 = arith.constant 0 : index
    %c0_5 = arith.constant 0 : index
    %c0_6 = arith.constant 0 : index
    %1 = vector.load %arg2[%c0_3, %c0_4, %c0_5, %c0_6] : memref<4x3x8x8xf32, #tpu.memory_space<vmem>>, vector<4x3x8x8xf32>
    %2 = vector.extract_strided_slice %0 {offsets = [0, 0, 0, 0], sizes = [4, 1, 8, 8], strides = [1, 1, 1, 1]} : vector<4x3x8x8xf32> to vector<4x1x8x8xf32>
    %3 = vector.shape_cast %2 : vector<4x1x8x8xf32> to vector<4x8x8xf32>
    %4 = vector.extract_strided_slice %0 {offsets = [0, 1, 0, 0], sizes = [4, 1, 8, 8], strides = [1, 1, 1, 1]} : vector<4x3x8x8xf32> to vector<4x1x8x8xf32>
    %5 = vector.shape_cast %4 : vector<4x1x8x8xf32> to vector<4x8x8xf32>
    %6 = vector.extract_strided_slice %0 {offsets = [0, 2, 0, 0], sizes = [4, 1, 8, 8], strides = [1, 1, 1, 1]} : vector<4x3x8x8xf32> to vector<4x1x8x8xf32>
    %7 = vector.shape_cast %6 : vector<4x1x8x8xf32> to vector<4x8x8xf32>
    %8 = vector.extract_strided_slice %1 {offsets = [0, 0, 0, 0], sizes = [4, 1, 8, 8], strides = [1, 1, 1, 1]} : vector<4x3x8x8xf32> to vector<4x1x8x8xf32>
    %9 = vector.shape_cast %8 : vector<4x1x8x8xf32> to vector<4x8x8xf32>
    %10 = vector.extract_strided_slice %1 {offsets = [0, 1, 0, 0], sizes = [4, 1, 8, 8], strides = [1, 1, 1, 1]} : vector<4x3x8x8xf32> to vector<4x1x8x8xf32>
    %11 = vector.shape_cast %10 : vector<4x1x8x8xf32> to vector<4x8x8xf32>
    %12 = vector.extract_strided_slice %1 {offsets = [0, 2, 0, 0], sizes = [4, 1, 8, 8], strides = [1, 1, 1, 1]} : vector<4x3x8x8xf32> to vector<4x1x8x8xf32>
    %13 = vector.shape_cast %12 : vector<4x1x8x8xf32> to vector<4x8x8xf32>
    %14 = arith.mulf %9, %9 : vector<4x8x8xf32>
    %15 = arith.mulf %11, %11 : vector<4x8x8xf32>
    %16 = arith.addf %14, %15 : vector<4x8x8xf32>
    %17 = arith.mulf %13, %13 : vector<4x8x8xf32>
    %18 = arith.addf %16, %17 : vector<4x8x8xf32>
    %19 = math.sqrt %18 : vector<4x8x8xf32>
    %cst = arith.constant 9.99999997E-7 : f32
    %20 = vector.broadcast %cst : f32 to vector<4x8x8xf32>
    %21 = arith.addf %19, %20 : vector<4x8x8xf32>
    %cst_7 = arith.constant 1.000000e+00 : f32
    %22 = vector.broadcast %cst_7 : f32 to vector<4x8x8xf32>
    %23 = arith.divf %22, %21 : vector<4x8x8xf32>
    %24 = arith.mulf %9, %23 : vector<4x8x8xf32>
    %25 = arith.mulf %11, %23 : vector<4x8x8xf32>
    %26 = arith.mulf %13, %23 : vector<4x8x8xf32>
    %27 = arith.mulf %24, %24 : vector<4x8x8xf32>
    %28 = arith.mulf %25, %25 : vector<4x8x8xf32>
    %29 = arith.addf %27, %28 : vector<4x8x8xf32>
    %cst_8 = arith.constant 0.000000e+00 : f32
    %30 = vector.broadcast %cst_8 : f32 to vector<4x8x8xf32>
    %31 = arith.subf %30, %29 : vector<4x8x8xf32>
    %cst_9 = arith.constant 9.99999997E-7 : f32
    %32 = vector.broadcast %cst_9 : f32 to vector<4x8x8xf32>
    %33 = arith.addf %26, %32 : vector<4x8x8xf32>
    %34 = arith.divf %31, %33 : vector<4x8x8xf32>
    %35 = arith.mulf %24, %24 : vector<4x8x8xf32>
    %36 = arith.mulf %25, %25 : vector<4x8x8xf32>
    %37 = arith.addf %35, %36 : vector<4x8x8xf32>
    %38 = arith.mulf %34, %34 : vector<4x8x8xf32>
    %39 = arith.addf %37, %38 : vector<4x8x8xf32>
    %40 = math.sqrt %39 : vector<4x8x8xf32>
    %cst_10 = arith.constant 9.99999997E-7 : f32
    %41 = vector.broadcast %cst_10 : f32 to vector<4x8x8xf32>
    %42 = arith.addf %40, %41 : vector<4x8x8xf32>
    %cst_11 = arith.constant 1.000000e+00 : f32
    %43 = vector.broadcast %cst_11 : f32 to vector<4x8x8xf32>
    %44 = arith.divf %43, %42 : vector<4x8x8xf32>
    %45 = arith.mulf %24, %44 : vector<4x8x8xf32>
    %46 = arith.mulf %25, %44 : vector<4x8x8xf32>
    %47 = arith.mulf %34, %44 : vector<4x8x8xf32>
    %48 = arith.mulf %46, %26 : vector<4x8x8xf32>
    %49 = arith.mulf %47, %25 : vector<4x8x8xf32>
    %50 = arith.subf %48, %49 : vector<4x8x8xf32>
    %51 = arith.mulf %47, %24 : vector<4x8x8xf32>
    %52 = arith.mulf %45, %26 : vector<4x8x8xf32>
    %53 = arith.subf %51, %52 : vector<4x8x8xf32>
    %54 = arith.mulf %45, %25 : vector<4x8x8xf32>
    %55 = arith.mulf %46, %24 : vector<4x8x8xf32>
    %56 = arith.subf %54, %55 : vector<4x8x8xf32>
    %57 = arith.mulf %45, %3 : vector<4x8x8xf32>
    %58 = arith.mulf %50, %5 : vector<4x8x8xf32>
    %59 = arith.addf %57, %58 : vector<4x8x8xf32>
    %60 = arith.mulf %24, %7 : vector<4x8x8xf32>
    %61 = arith.addf %59, %60 : vector<4x8x8xf32>
    %62 = arith.mulf %46, %3 : vector<4x8x8xf32>
    %63 = arith.mulf %53, %5 : vector<4x8x8xf32>
    %64 = arith.addf %62, %63 : vector<4x8x8xf32>
    %65 = arith.mulf %25, %7 : vector<4x8x8xf32>
    %66 = arith.addf %64, %65 : vector<4x8x8xf32>
    %67 = arith.mulf %47, %3 : vector<4x8x8xf32>
    %68 = arith.mulf %56, %5 : vector<4x8x8xf32>
    %69 = arith.addf %67, %68 : vector<4x8x8xf32>
    %70 = arith.mulf %26, %7 : vector<4x8x8xf32>
    %71 = arith.addf %69, %70 : vector<4x8x8xf32>
    %72 = arith.mulf %45, %61 : vector<4x8x8xf32>
    %73 = arith.mulf %46, %66 : vector<4x8x8xf32>
    %74 = arith.addf %72, %73 : vector<4x8x8xf32>
    %75 = arith.mulf %50, %61 : vector<4x8x8xf32>
    %76 = arith.mulf %53, %66 : vector<4x8x8xf32>
    %77 = arith.addf %75, %76 : vector<4x8x8xf32>
    %78 = arith.mulf %24, %61 : vector<4x8x8xf32>
    %79 = arith.mulf %25, %66 : vector<4x8x8xf32>
    %80 = arith.addf %78, %79 : vector<4x8x8xf32>
    %81 = vector.shape_cast %74 : vector<4x8x8xf32> to vector<4x1x8x8xf32>
    %82 = vector.shape_cast %77 : vector<4x8x8xf32> to vector<4x1x8x8xf32>
    %83 = vector.shape_cast %80 : vector<4x8x8xf32> to vector<4x1x8x8xf32>
    %84 = tpu.concatenate %81, %82, %83 in 1 : vector<4x1x8x8xf32>, vector<4x1x8x8xf32>, vector<4x1x8x8xf32> -> vector<4x3x8x8xf32>
    %85 = arith.mulf %46, %61 : vector<4x8x8xf32>
    %86 = arith.mulf %45, %66 : vector<4x8x8xf32>
    %87 = arith.subf %85, %86 : vector<4x8x8xf32>
    %88 = arith.mulf %53, %61 : vector<4x8x8xf32>
    %89 = arith.mulf %50, %66 : vector<4x8x8xf32>
    %90 = arith.subf %88, %89 : vector<4x8x8xf32>
    %91 = arith.mulf %25, %61 : vector<4x8x8xf32>
    %92 = arith.mulf %24, %66 : vector<4x8x8xf32>
    %93 = arith.subf %91, %92 : vector<4x8x8xf32>
    %94 = vector.shape_cast %87 : vector<4x8x8xf32> to vector<4x1x8x8xf32>
    %95 = vector.shape_cast %90 : vector<4x8x8xf32> to vector<4x1x8x8xf32>
    %96 = vector.shape_cast %93 : vector<4x8x8xf32> to vector<4x1x8x8xf32>
    %97 = tpu.concatenate %94, %95, %96 in 1 : vector<4x1x8x8xf32>, vector<4x1x8x8xf32>, vector<4x1x8x8xf32> -> vector<4x3x8x8xf32>
    %98 = arith.mulf %47, %71 : vector<4x8x8xf32>
    %99 = arith.mulf %56, %71 : vector<4x8x8xf32>
    %100 = arith.mulf %26, %71 : vector<4x8x8xf32>
    %101 = vector.shape_cast %98 : vector<4x8x8xf32> to vector<4x1x8x8xf32>
    %102 = vector.shape_cast %99 : vector<4x8x8xf32> to vector<4x1x8x8xf32>
    %103 = vector.shape_cast %100 : vector<4x8x8xf32> to vector<4x1x8x8xf32>
    %104 = tpu.concatenate %101, %102, %103 in 1 : vector<4x1x8x8xf32>, vector<4x1x8x8xf32>, vector<4x1x8x8xf32> -> vector<4x3x8x8xf32>
    %105 = tpu.concatenate %84, %97, %104 in 3 : vector<4x3x8x8xf32>, vector<4x3x8x8xf32>, vector<4x3x8x8xf32> -> vector<4x3x8x24xf32>
    %106 = vector.shape_cast %105 : vector<4x3x8x24xf32> to vector<96x24xf32>
    %c0_12 = arith.constant 0 : index
    %c0_13 = arith.constant 0 : index
    %107 = vector.load %arg3[%c0_12, %c0_13] : memref<24x16xf32, #tpu.memory_space<vmem>>, vector<24x16xf32>
    %cst_14 = arith.constant dense<0.000000e+00> : vector<96x16xf32>
    %108 = tpu.matmul %106, %107, %cst_14 {dimension_numbers = #tpu.dot_dimension_numbers<[1], [0], [0], [1], [0, 0, 1, 1], [], []>, precision = #tpu.contract_precision<fp32>} : vector<96x24xf32>, vector<24x16xf32>, vector<96x16xf32> -> vector<96x16xf32>
    %c0_15 = arith.constant 0 : index
    %c0_16 = arith.constant 0 : index
    %109 = vector.load %arg4[%c0_15, %c0_16] : memref<16x16xf32, #tpu.memory_space<vmem>>, vector<16x16xf32>
    %cst_17 = arith.constant dense<0.000000e+00> : vector<96x16xf32>
    %110 = tpu.matmul %108, %109, %cst_17 {dimension_numbers = #tpu.dot_dimension_numbers<[1], [0], [0], [1], [0, 0, 1, 1], [], []>, precision = #tpu.contract_precision<fp32>} : vector<96x16xf32>, vector<16x16xf32>, vector<96x16xf32> -> vector<96x16xf32>
    %111 = vector.shape_cast %108 : vector<96x16xf32> to vector<4x3x8x16xf32>
    %112 = vector.shape_cast %110 : vector<96x16xf32> to vector<4x3x8x16xf32>
    %113 = arith.mulf %111, %112 : vector<4x3x8x16xf32>
    %cst_18 = arith.constant dense<0.000000e+00> : vector<4x8x16xf32>
    %114 = vector.multi_reduction <add>, %113, %cst_18 [1] : vector<4x3x8x16xf32> to vector<4x8x16xf32>
    %115 = vector.shape_cast %114 : vector<4x8x16xf32> to vector<4x1x8x16xf32>
    %116 = arith.mulf %112, %112 : vector<4x3x8x16xf32>
    %cst_19 = arith.constant dense<0.000000e+00> : vector<4x8x16xf32>
    %117 = vector.multi_reduction <add>, %116, %cst_19 [1] : vector<4x3x8x16xf32> to vector<4x8x16xf32>
    %118 = vector.shape_cast %117 : vector<4x8x16xf32> to vector<4x1x8x16xf32>
    %cst_20 = arith.constant 9.99999997E-7 : f32
    %119 = vector.broadcast %cst_20 : f32 to vector<4x1x8x16xf32>
    %120 = arith.addf %118, %119 : vector<4x1x8x16xf32>
    %121 = arith.divf %115, %120 : vector<4x1x8x16xf32>
    %cst_21 = arith.constant 0.000000e+00 : f32
    %122 = vector.broadcast %cst_21 : f32 to vector<4x1x8x16xf32>
    %123 = arith.cmpf oge, %115, %122 : vector<4x1x8x16xf32>
    %cst_22 = arith.constant 0.000000e+00 : f32
    %124 = vector.broadcast %cst_22 : f32 to vector<4x1x8x16xf32>
    %125 = arith.select %123, %124, %121 : vector<4x1x8x16xi1>, vector<4x1x8x16xf32>
    %cst_23 = arith.constant 8.000000e-01 : f32
    %126 = vector.broadcast %cst_23 : f32 to vector<4x1x8x16xf32>
    %127 = arith.mulf %126, %125 : vector<4x1x8x16xf32>
    %128 = vector.broadcast %127 : vector<4x1x8x16xf32> to vector<4x3x8x16xf32>
    %129 = arith.mulf %128, %112 : vector<4x3x8x16xf32>
    %130 = arith.subf %111, %129 : vector<4x3x8x16xf32>
    %c0_24 = arith.constant 0 : index
    %c0_25 = arith.constant 0 : index
    %c0_26 = arith.constant 0 : index
    %c0_27 = arith.constant 0 : index
    %131 = vector.load %arg5[%c0_24, %c0_25, %c0_26, %c0_27] : memref<4x3x8x16xf32, #tpu.memory_space<vmem>>, vector<4x3x8x16xf32>
    tpu.vector_store %arg5[%c0_24, %c0_25, %c0_26, %c0_27], %130 {strides = array<i32>} : memref<4x3x8x16xf32, #tpu.memory_space<vmem>>, vector<4x3x8x16xf32>,
    return
  }
  func.func @transform_0(%arg0: i32) -> (i32, i32, i32, i32) {
    %c0_i32 = arith.constant 0 : i32
    %c0_i32_0 = arith.constant 0 : i32
    %c0_i32_1 = arith.constant 0 : i32
    %c0_i32_2 = arith.constant 0 : i32
    return %arg0, %c0_i32, %c0_i32_0, %c0_i32_1 : i32, i32, i32, i32
  }
  func.func @transform_1(%arg0: i32) -> (i32, i32, i32, i32) {
    %c0_i32 = arith.constant 0 : i32
    %c0_i32_0 = arith.constant 0 : i32
    %c0_i32_1 = arith.constant 0 : i32
    %c0_i32_2 = arith.constant 0 : i32
    return %arg0, %c0_i32, %c0_i32_0, %c0_i32_1 : i32, i32, i32, i32
  }
  func.func @transform_2(%arg0: i32) -> (i32, i32) {
    %c0_i32 = arith.constant 0 : i32
    %c0_i32_0 = arith.constant 0 : i32
    %c0_i32_1 = arith.constant 0 : i32
    return %c0_i32, %c0_i32_0 : i32, i32
  }
  func.func @transform_3(%arg0: i32) -> (i32, i32) {
    %c0_i32 = arith.constant 0 : i32
    %c0_i32_0 = arith.constant 0 : i32
    %c0_i32_1 = arith.constant 0 : i32
    return %c0_i32, %c0_i32_0 : i32, i32
  }
  func.func @transform_4(%arg0: i32) -> (i32, i32, i32, i32) {
    %c0_i32 = arith.constant 0 : i32
    %c0_i32_0 = arith.constant 0 : i32
    %c0_i32_1 = arith.constant 0 : i32
    %c0_i32_2 = arith.constant 0 : i32
    return %arg0, %c0_i32, %c0_i32_0, %c0_i32_1 : i32, i32, i32, i32
  }
}

</mosaic_0001>

<llo_original>
// kernel: complex_linear_and_leaky_relu.1
$region0: #{complex_linear_and_leaky_relu.1}
  #allocation0 [shape = 'u32[]', space=smem, size = 0x4, offset = 0x4, fixed_abs, tag = 'smem constant byte address 0x4 - core index']
  #allocation1 [shape = 'u32[144,128]{1,0:T(1,128)}', space=vmem, size = 0x12000, scoped, tag = 'internal scratch']
  %s0 = inlined_call_operand.hbm [shape: f32[8,3,8,8], index: 0, kind: input, shape index: {}]
  %s1 = inlined_call_operand.hbm [shape: f32[8,3,8,8], index: 1, kind: input, shape index: {}]
  %s2 = inlined_call_operand.vmem [shape: f32[24,16], index: 2, kind: input, shape index: {}]
  %s3 = inlined_call_operand.vmem [shape: f32[16,16], index: 3, kind: input, shape index: {}]
  %s4 = inlined_call_operand.hbm [shape: f32[8,3,8,16], index: 4, kind: output, shape index: {}]
  %s5 = sld [smem:[#allocation0]]
  $region57: #{complex_linear_and_leaky_relu.1} parent=0
    _
  %s7 = ssub.s32 1, %s5
  %s8 = scalar_select 0, %s7, %s5
  $region1: #{complex_linear_and_leaky_relu.1} parent=0
    #allocation2 [shape = 'u8[98304]{0}', space=vmem, size = 0x18000, scoped, tag = 'input window, operand 0']
    #allocation3 [shape = 's32[2]{0}', space=sflag, size = 0x8, scoped, tag = 'scoped memory for complex_linear_and_leaky_relu.1']
    #allocation4 [shape = 's32[2]{0}', space=sflag, size = 0x8, scoped, tag = 'scoped memory for complex_linear_and_leaky_relu.1']
    #allocation5 [shape = 'u8[98304]{0}', space=vmem, size = 0x18000, scoped, tag = 'input window, operand 1']
    #allocation6 [shape = 's32[2]{0}', space=sflag, size = 0x8, scoped, tag = 'scoped memory for complex_linear_and_leaky_relu.1']
    #allocation7 [shape = 'u8[98304]{0}', space=vmem, size = 0x18000, scoped, tag = 'output window, operand 0']
    %9 = vsyncpa [#allocation3], 0
    %s10 = scalar_lea.sflag [#allocation3], 1
    %11 = vsyncpa %s10, 0
    %12 = vsyncpa [#allocation6], 0
    %s13 = scalar_lea.sflag [#allocation6], 1
    %14 = vsyncpa %s13, 0
    %15 = vsyncpa [#allocation4], 0
    %s16 = scalar_lea.sflag [#allocation4], 1
    %17 = vsyncpa %s16, 0
    loop: start=0, step=1, limit=4
    $region2: #{complex_linear_and_leaky_relu.1} parent=1 // loop_pre_header
      _
    $region3: #{complex_linear_and_leaky_relu.1} parent=1 // loop_header
      %s19 = sphi 0, %s23
      %p20 = scmp.ge.s32.totalorder %s19, 4
      %s29 = sphi 0, %s31
      %s32 = sphi 0, %s29
      %s33 = sphi 0, %s32
      %s49 = sphi 0, %s33
      %s55 = sphi 0, %s57
      %s58 = sphi 0, %s55
      %s59 = sphi 0, %s58
      %s75 = sphi 0, %s59
      %s79 = sphi 0, %s79
      %s81 = sphi 0, %s79
      %s82 = sphi 0, %s81
      %s96 = sphi 0, %s82
      %s100 = sphi 0, %s100
      %s102 = sphi 0, %s100
      %s103 = sphi 0, %s102
      %s117 = sphi 0, %s103
      %s123 = sphi 0, %s125
      %s126 = sphi 0, %s123
      %s127 = sphi 0, %s126
      %s143 = sphi 0, %s127
    $region4: #{complex_linear_and_leaky_relu.1} parent=1 // loop_header_branch
      %22 = sbr.rel (%p20) target = $region8
    $region5: #{complex_linear_and_leaky_relu.1} parent=1 // loop_body
      %s24 = ssub.s32 %s19, 1
      %s25 = ssub.s32 %s19, 2
      %s26 = sadd.s32 %s19, 1
      %s27 = ssub.s32 %s19, %s26
      %p28 = scmp.eq.s32.totalorder %s27, 0
      %s30 = sadd.s32 %s29, 1
      %s31 = scalar_select %p28, %s29, %s30
      %p34 = pneg %p28
      %p35 = scmp.eq.s32.totalorder %s19, 1
      %p36 = por %p34, %p35
      %p37 = scmp.ne.s32.totalorder %s29, %s32
      %p38 = scmp.eq.s32.totalorder %s19, 0
      %p39 = por %p37, %p38
      %p40 = scmp.ne.s32.totalorder %s29, %s32
      %p41 = scmp.eq.s32.totalorder %s24, 1
      %p42 = por %p40, %p41
      %p43 = scmp.ne.s32.totalorder %s32, %s33
      %p44 = scmp.eq.s32.totalorder %s24, 0
      %p45 = por %p43, %p44
      %p46 = scmp.ne.s32.totalorder %s32, %s33
      %p47 = scmp.eq.s32.totalorder %s25, 1
      %p48 = por %p46, %p47
      %p50 = scmp.ne.s32.totalorder %s33, %s49
      %p51 = scmp.eq.s32.totalorder %s25, 0
      %p52 = por %p50, %p51
      %s53 = ssub.s32 %s19, %s26
      %p54 = scmp.eq.s32.totalorder %s53, 0
      %s56 = sadd.s32 %s55, 1
      %s57 = scalar_select %p54, %s55, %s56
      %p60 = pneg %p54
      %p61 = scmp.eq.s32.totalorder %s19, 1
      %p62 = por %p60, %p61
      %p63 = scmp.ne.s32.totalorder %s55, %s58
      %p64 = scmp.eq.s32.totalorder %s19, 0
      %p65 = por %p63, %p64
      %p66 = scmp.ne.s32.totalorder %s55, %s58
      %p67 = scmp.eq.s32.totalorder %s24, 1
      %p68 = por %p66, %p67
      %p69 = scmp.ne.s32.totalorder %s58, %s59
      %p70 = scmp.eq.s32.totalorder %s24, 0
      %p71 = por %p69, %p70
      %p72 = scmp.ne.s32.totalorder %s58, %s59
      %p73 = scmp.eq.s32.totalorder %s25, 1
      %p74 = por %p72, %p73
      %p76 = scmp.ne.s32.totalorder %s59, %s75
      %p77 = scmp.eq.s32.totalorder %s25, 0
      %p78 = por %p76, %p77
      %s80 = sadd.s32 %s79, 1
      %p83 = scmp.eq.s32.totalorder %s19, 1
      %p84 = scmp.ne.s32.totalorder %s79, %s81
      %p85 = scmp.eq.s32.totalorder %s19, 0
      %p86 = por %p84, %p85
      %p87 = scmp.ne.s32.totalorder %s79, %s81
      %p88 = scmp.eq.s32.totalorder %s24, 1
      %p89 = por %p87, %p88
      %p90 = scmp.ne.s32.totalorder %s81, %s82
      %p91 = scmp.eq.s32.totalorder %s24, 0
      %p92 = por %p90, %p91
      %p93 = scmp.ne.s32.totalorder %s81, %s82
      %p94 = scmp.eq.s32.totalorder %s25, 1
      %p95 = por %p93, %p94
      %p97 = scmp.ne.s32.totalorder %s82, %s96
      %p98 = scmp.eq.s32.totalorder %s25, 0
      %p99 = por %p97, %p98
      %s101 = sadd.s32 %s100, 1
      %p104 = scmp.eq.s32.totalorder %s19, 1
      %p105 = scmp.ne.s32.totalorder %s100, %s102
      %p106 = scmp.eq.s32.totalorder %s19, 0
      %p107 = por %p105, %p106
      %p108 = scmp.ne.s32.totalorder %s100, %s102
      %p109 = scmp.eq.s32.totalorder %s24, 1
      %p110 = por %p108, %p109
      %p111 = scmp.ne.s32.totalorder %s102, %s103
      %p112 = scmp.eq.s32.totalorder %s24, 0
      %p113 = por %p111, %p112
      %p114 = scmp.ne.s32.totalorder %s102, %s103
      %p115 = scmp.eq.s32.totalorder %s25, 1
      %p116 = por %p114, %p115
      %p118 = scmp.ne.s32.totalorder %s103, %s117
      %p119 = scmp.eq.s32.totalorder %s25, 0
      %p120 = por %p118, %p119
      %s121 = ssub.s32 %s19, %s26
      %p122 = scmp.eq.s32.totalorder %s121, 0
      %s124 = sadd.s32 %s123, 1
      %s125 = scalar_select %p122, %s123, %s124
      %p128 = pneg %p122
      %p129 = scmp.eq.s32.totalorder %s19, 1
      %p130 = por %p128, %p129
      %p131 = scmp.ne.s32.totalorder %s123, %s126
      %p132 = scmp.eq.s32.totalorder %s19, 0
      %p133 = por %p131, %p132
      %p134 = scmp.ne.s32.totalorder %s123, %s126
      %p135 = scmp.eq.s32.totalorder %s24, 1
      %p136 = por %p134, %p135
      %p137 = scmp.ne.s32.totalorder %s126, %s127
      %p138 = scmp.eq.s32.totalorder %s24, 0
      %p139 = por %p137, %p138
      %p140 = scmp.ne.s32.totalorder %s126, %s127
      %p141 = scmp.eq.s32.totalorder %s25, 1
      %p142 = por %p140, %p141
      %p144 = scmp.ne.s32.totalorder %s127, %s143
      %p145 = scmp.eq.s32.totalorder %s25, 0
      %p146 = por %p144, %p145
      %p147 = scmp.le.s32.totalorder 1, %s19
      %p148 = scmp.lt.s32.totalorder %s19, 3
      %p149 = pnand %p147, %p148
      %p150 = pneg %p149
      // Predicated region
      $region9: #{complex_linear_and_leaky_relu.1} parent=5 // pred_check
        _
      $region10: #{complex_linear_and_leaky_relu.1} parent=5 // pred_check_branch
        %152 = sbr.rel (%p149) target = $region12
      $region11: #{complex_linear_and_leaky_relu.1} parent=5 // pred_region
        %s153 = ssub.s32 %s19, 1
        // Predicated region
        $region13: #{complex_linear_and_leaky_relu.1} parent=11 // pred_check
          %p154 = pneg %p92
        $region14: #{complex_linear_and_leaky_relu.1} parent=11 // pred_check_branch
          %156 = sbr.rel (%p154) target = $region16
        $region15: #{complex_linear_and_leaky_relu.1} parent=11 // pred_region
          _
        $region16: #{complex_linear_and_leaky_relu.1} parent=11 // pred_fallthru
          _
        // Predicated region
        $region17: #{complex_linear_and_leaky_relu.1} parent=11 // pred_check
          %p157 = pneg %p113
        $region18: #{complex_linear_and_leaky_relu.1} parent=11 // pred_check_branch
          %159 = sbr.rel (%p157) target = $region20
        $region19: #{complex_linear_and_leaky_relu.1} parent=11 // pred_region
          _
        $region20: #{complex_linear_and_leaky_relu.1} parent=11 // pred_fallthru
          _
      $region12: #{complex_linear_and_leaky_relu.1} parent=5 // pred_fallthru
        _
      %p160 = scmp.lt.s32.totalorder %s19, 2
      // Predicated region
      $region21: #{complex_linear_and_leaky_relu.1} parent=5 // pred_check
        %p161 = pneg %p160
      $region22: #{complex_linear_and_leaky_relu.1} parent=5 // pred_check_branch
        %163 = sbr.rel (%p161) target = $region24
      $region23: #{complex_linear_and_leaky_relu.1} parent=5 // pred_region
        // Predicated region
        $region25: #{complex_linear_and_leaky_relu.1} parent=23 // pred_check
          %p164 = pneg %p39
        $region26: #{complex_linear_and_leaky_relu.1} parent=23 // pred_check_branch
          %166 = sbr.rel (%p164) target = $region28
        $region27: #{complex_linear_and_leaky_relu.1} parent=23 // pred_region
          %s167 = sand.u32 %s29, 1
          %s168 = scalar_lea.sflag [#allocation3], %s167
          %s169 = sand.u32 %s29, 1
          %s170 = smul.addr %s169, 96
          %s171 = scalar_lea.vmem [#allocation2], %s170
          %s172 = smul.u32 4, %s19
          %s174 = ssub.s32 1536, 1536
          %175 = vsyncadd %s168, %s174
          %s176 = smul.addr %s172, 3
          %s177 = smul.addr %s176, 128
          %s178 = scalar_lea.hbm %s0, %s177
          %s179 = sshll.u32 %s171, 4
          %s180 = int_to_ptr.vmem [resolvable:$true] %s179
          %185 = dma.hbm_to_vmem [thread:$0]  %s178, 1536, %s180, %s168, 128, 128, 8
        $region28: #{complex_linear_and_leaky_relu.1} parent=23 // pred_fallthru
          _
        // Predicated region
        $region29: #{complex_linear_and_leaky_relu.1} parent=23 // pred_check
          %p186 = pneg %p65
        $region30: #{complex_linear_and_leaky_relu.1} parent=23 // pred_check_branch
          %188 = sbr.rel (%p186) target = $region32
        $region31: #{complex_linear_and_leaky_relu.1} parent=23 // pred_region
          %s189 = sand.u32 %s55, 1
          %s190 = scalar_lea.sflag [#allocation6], %s189
          %s191 = sand.u32 %s55, 1
          %s192 = smul.addr %s191, 96
          %s193 = scalar_lea.vmem [#allocation5], %s192
          %s194 = smul.u32 4, %s19
          %s196 = ssub.s32 1536, 1536
          %197 = vsyncadd %s190, %s196
          %s198 = smul.addr %s194, 3
          %s199 = smul.addr %s198, 128
          %s200 = scalar_lea.hbm %s1, %s199
          %s201 = sshll.u32 %s193, 4
          %s202 = int_to_ptr.vmem [resolvable:$true] %s201
          %207 = dma.hbm_to_vmem [thread:$0]  %s200, 1536, %s202, %s190, 128, 128, 8
        $region32: #{complex_linear_and_leaky_relu.1} parent=23 // pred_fallthru
          _
      $region24: #{complex_linear_and_leaky_relu.1} parent=5 // pred_fallthru
        _
      %p208 = scmp.le.s32.totalorder 1, %s19
      %p209 = scmp.lt.s32.totalorder %s19, 3
      %p210 = pnand %p208, %p209
      %p211 = pneg %p210
      // Predicated region
      $region33: #{complex_linear_and_leaky_relu.1} parent=5 // pred_check
        _
      $region34: #{complex_linear_and_leaky_relu.1} parent=5 // pred_check_branch
        %213 = sbr.rel (%p210) target = $region36
      $region35: #{complex_linear_and_leaky_relu.1} parent=5 // pred_region
        %s214 = ssub.s32 %s19, 1
        %s215 = sand.u32 %s32, 1
        %s216 = scalar_lea.sflag [#allocation3], %s215
        %s217 = sand.u32 %s32, 1
        %s218 = smul.addr %s217, 96
        %s219 = scalar_lea.vmem [#allocation2], %s218
        // Predicated region
        $region37: #{complex_linear_and_leaky_relu.1} parent=35 // pred_check
          %p220 = pneg %p45
        $region38: #{complex_linear_and_leaky_relu.1} parent=35 // pred_check_branch
          %222 = sbr.rel (%p220) target = $region40
        $region39: #{complex_linear_and_leaky_relu.1} parent=35 // pred_region
          %223 = dma.done %s216, 1536
        $region40: #{complex_linear_and_leaky_relu.1} parent=35 // pred_fallthru
          _
        %s224 = sand.u32 %s58, 1
        %s225 = scalar_lea.sflag [#allocation6], %s224
        %s226 = sand.u32 %s58, 1
        %s227 = smul.addr %s226, 96
        %s228 = scalar_lea.vmem [#allocation5], %s227
        // Predicated region
        $region41: #{complex_linear_and_leaky_relu.1} parent=35 // pred_check
          %p229 = pneg %p71
        $region42: #{complex_linear_and_leaky_relu.1} parent=35 // pred_check_branch
          %231 = sbr.rel (%p229) target = $region44
        $region43: #{complex_linear_and_leaky_relu.1} parent=35 // pred_region
          %232 = dma.done %s225, 1536
        $region44: #{complex_linear_and_leaky_relu.1} parent=35 // pred_fallthru
          _
        %s233 = sand.u32 %s32, 1
        %s234 = scalar_lea.sflag [#allocation3], %s233
        %s235 = sand.u32 %s32, 1
        %s236 = smul.addr %s235, 96
        %s237 = scalar_lea.vmem [#allocation2], %s236
        %p238 = pneg %p45
        %p239 = pneg %p42
        %s240 = sand.u32 %s58, 1
        %s241 = scalar_lea.sflag [#allocation6], %s240
        %s242 = sand.u32 %s58, 1
        %s243 = smul.addr %s242, 96
        %s244 = scalar_lea.vmem [#allocation5], %s243
        %p245 = pneg %p71
        %p246 = pneg %p68
        %p247 = pneg %p92
        %p248 = pneg %p89
        %p249 = pneg %p113
        %p250 = pneg %p110
        %p251 = pneg %p139
        %p252 = pneg %p136
        %s253 = sand.u32 %s126, 1
        %s254 = scalar_lea.sflag [#allocation4], %s253
        %s255 = sand.u32 %s126, 1
        %s256 = smul.addr %s255, 96
        %s257 = scalar_lea.vmem [#allocation7], %s256
        %s258 = smul.u32 4, %s24
        %s259 = smul.u32 4, %s24
        %s260 = smul.u32 4, %s24
        %v261 = vld [vmem:[%s219] sm:$0xff]
        %v262 = vld [vmem:[%s219 + $0x8] sm:$0xff]
        %v263 = vld [vmem:[%s219 + $0x10] sm:$0xff]
        %v264 = vld [vmem:[%s219 + $0x18] sm:$0xff]
        %v265 = vld [vmem:[%s219 + $0x20] sm:$0xff]
        %v266 = vld [vmem:[%s219 + $0x28] sm:$0xff]
        %v267 = vld [vmem:[%s219 + $0x30] sm:$0xff]
        %v268 = vld [vmem:[%s219 + $0x38] sm:$0xff]
        %v269 = vld [vmem:[%s219 + $0x40] sm:$0xff]
        %v270 = vld [vmem:[%s219 + $0x48] sm:$0xff]
        %v271 = vld [vmem:[%s219 + $0x50] sm:$0xff]
        %v272 = vld [vmem:[%s219 + $0x58] sm:$0xff]
        %v273 = vld [vmem:[%s228] sm:$0xff]
        %v274 = vld [vmem:[%s228 + $0x8] sm:$0xff]
        %v275 = vld [vmem:[%s228 + $0x10] sm:$0xff]
        %v276 = vld [vmem:[%s228 + $0x18] sm:$0xff]
        %v277 = vld [vmem:[%s228 + $0x20] sm:$0xff]
        %v278 = vld [vmem:[%s228 + $0x28] sm:$0xff]
        %v279 = vld [vmem:[%s228 + $0x30] sm:$0xff]
        %v280 = vld [vmem:[%s228 + $0x38] sm:$0xff]
        %v281 = vld [vmem:[%s228 + $0x40] sm:$0xff]
        %v282 = vld [vmem:[%s228 + $0x48] sm:$0xff]
        %v283 = vld [vmem:[%s228 + $0x50] sm:$0xff]
        %v284 = vld [vmem:[%s228 + $0x58] sm:$0xff]
        %v285 = vmul.f32 %v273, %v273
        %v286 = vmul.f32 %v276, %v276
        %v287 = vmul.f32 %v279, %v279
        %v288 = vmul.f32 %v282, %v282
        %v289 = vmul.f32 %v274, %v274
        %v290 = vmul.f32 %v277, %v277
        %v291 = vmul.f32 %v280, %v280
        %v292 = vmul.f32 %v283, %v283
        %v293 = vadd.f32 %v285, %v289
        %v294 = vadd.f32 %v286, %v290
        %v295 = vadd.f32 %v287, %v291
        %v296 = vadd.f32 %v288, %v292
        %v297 = vmul.f32 %v275, %v275
        %v298 = vmul.f32 %v278, %v278
        %v299 = vmul.f32 %v281, %v281
        %v300 = vmul.f32 %v284, %v284
        %v301 = vadd.f32 %v293, %v297
        %v302 = vadd.f32 %v294, %v298
        %v303 = vadd.f32 %v295, %v299
        %v304 = vadd.f32 %v296, %v300
        %v305 = vrsqrt.pop %v301
        %v306 = vmul.f32 %v301, %v305
        %vm307 = vcmp.eq.f32.partialorder %v301, inf
        %v308 = vsel %vm307, %v301, %v306
        %vm309 = vcmp.eq.f32.partialorder %v301, 0.0
        %v310 = vand.u32 %v301, 2147483648
        %v311 = vsel %vm309, %v310, %v308
        %v312 = vrsqrt.pop %v302
        %v313 = vmul.f32 %v302, %v312
        %vm314 = vcmp.eq.f32.partialorder %v302, inf
        %v315 = vsel %vm314, %v302, %v313
        %vm316 = vcmp.eq.f32.partialorder %v302, 0.0
        %v317 = vand.u32 %v302, 2147483648
        %v318 = vsel %vm316, %v317, %v315
        %v319 = vrsqrt.pop %v303
        %v320 = vmul.f32 %v303, %v319
        %vm321 = vcmp.eq.f32.partialorder %v303, inf
        %v322 = vsel %vm321, %v303, %v320
        %vm323 = vcmp.eq.f32.partialorder %v303, 0.0
        %v324 = vand.u32 %v303, 2147483648
        %v325 = vsel %vm323, %v324, %v322
        %v326 = vrsqrt.pop %v304
        %v327 = vmul.f32 %v304, %v326
        %vm328 = vcmp.eq.f32.partialorder %v304, inf
        %v329 = vsel %vm328, %v304, %v327
        %vm330 = vcmp.eq.f32.partialorder %v304, 0.0
        %v331 = vand.u32 %v304, 2147483648
        %v332 = vsel %vm330, %v331, %v329
        %v333 = vadd.f32 %v311, 1e-06
        %v334 = vadd.f32 %v318, 1e-06
        %v335 = vadd.f32 %v325, 1e-06
        %v336 = vadd.f32 %v332, 1e-06
        %v337 = vrcp.pop %v333
        %v338 = vmul.f32 1.0, %v337
        %v339 = vrcp.pop %v334
        %v340 = vmul.f32 1.0, %v339
        %v341 = vrcp.pop %v335
        %v342 = vmul.f32 1.0, %v341
        %v343 = vrcp.pop %v336
        %v344 = vmul.f32 1.0, %v343
        %v345 = vmul.f32 %v273, %v338
        %v346 = vmul.f32 %v276, %v340
        %v347 = vmul.f32 %v279, %v342
        %v348 = vmul.f32 %v282, %v344
        %v349 = vmul.f32 %v274, %v338
        %v350 = vmul.f32 %v277, %v340
        %v351 = vmul.f32 %v280, %v342
        %v352 = vmul.f32 %v283, %v344
        %v353 = vmul.f32 %v275, %v338
        %v354 = vmul.f32 %v278, %v340
        %v355 = vmul.f32 %v281, %v342
        %v356 = vmul.f32 %v284, %v344
        %v357 = vmul.f32 %v345, %v345
        %v358 = vmul.f32 %v346, %v346
        %v359 = vmul.f32 %v347, %v347
        %v360 = vmul.f32 %v348, %v348
        %v361 = vmul.f32 %v349, %v349
        %v362 = vmul.f32 %v350, %v350
        %v363 = vmul.f32 %v351, %v351
        %v364 = vmul.f32 %v352, %v352
        %v365 = vadd.f32 %v357, %v361
        %v366 = vadd.f32 %v358, %v362
        %v367 = vadd.f32 %v359, %v363
        %v368 = vadd.f32 %v360, %v364
        %v369 = vsub.f32 0.0, %v365
        %v370 = vsub.f32 0.0, %v366
        %v371 = vsub.f32 0.0, %v367
        %v372 = vsub.f32 0.0, %v368
        %v373 = vadd.f32 %v353, 1e-06
        %v374 = vadd.f32 %v354, 1e-06
        %v375 = vadd.f32 %v355, 1e-06
        %v376 = vadd.f32 %v356, 1e-06
        %v377 = vrcp.pop %v373
        %v378 = vmul.f32 %v369, %v377
        %v379 = vrcp.pop %v374
        %v380 = vmul.f32 %v370, %v379
        %v381 = vrcp.pop %v375
        %v382 = vmul.f32 %v371, %v381
        %v383 = vrcp.pop %v376
        %v384 = vmul.f32 %v372, %v383
        %v385 = vmul.f32 %v378, %v378
        %v386 = vmul.f32 %v380, %v380
        %v387 = vmul.f32 %v382, %v382
        %v388 = vmul.f32 %v384, %v384
        %v389 = vadd.f32 %v365, %v385
        %v390 = vadd.f32 %v366, %v386
        %v391 = vadd.f32 %v367, %v387
        %v392 = vadd.f32 %v368, %v388
        %v393 = vrsqrt.pop %v389
        %v394 = vmul.f32 %v389, %v393
        %vm395 = vcmp.eq.f32.partialorder %v389, inf
        %v396 = vsel %vm395, %v389, %v394
        %vm397 = vcmp.eq.f32.partialorder %v389, 0.0
        %v398 = vand.u32 %v389, 2147483648
        %v399 = vsel %vm397, %v398, %v396
        %v400 = vrsqrt.pop %v390
        %v401 = vmul.f32 %v390, %v400
        %vm402 = vcmp.eq.f32.partialorder %v390, inf
        %v403 = vsel %vm402, %v390, %v401
        %vm404 = vcmp.eq.f32.partialorder %v390, 0.0
        %v405 = vand.u32 %v390, 2147483648
        %v406 = vsel %vm404, %v405, %v403
        %v407 = vrsqrt.pop %v391
        %v408 = vmul.f32 %v391, %v407
        %vm409 = vcmp.eq.f32.partialorder %v391, inf
        %v410 = vsel %vm409, %v391, %v408
        %vm411 = vcmp.eq.f32.partialorder %v391, 0.0
        %v412 = vand.u32 %v391, 2147483648
        %v413 = vsel %vm411, %v412, %v410
        %v414 = vrsqrt.pop %v392
        %v415 = vmul.f32 %v392, %v414
        %vm416 = vcmp.eq.f32.partialorder %v392, inf
        %v417 = vsel %vm416, %v392, %v415
        %vm418 = vcmp.eq.f32.partialorder %v392, 0.0
        %v419 = vand.u32 %v392, 2147483648
        %v420 = vsel %vm418, %v419, %v417
        %v421 = vadd.f32 %v399, 1e-06
        %v422 = vadd.f32 %v406, 1e-06
        %v423 = vadd.f32 %v413, 1e-06
        %v424 = vadd.f32 %v420, 1e-06
        %v425 = vrcp.pop %v421
        %v426 = vmul.f32 1.0, %v425
        %v427 = vrcp.pop %v422
        %v428 = vmul.f32 1.0, %v427
        %v429 = vrcp.pop %v423
        %v430 = vmul.f32 1.0, %v429
        %v431 = vrcp.pop %v424
        %v432 = vmul.f32 1.0, %v431
        %v433 = vmul.f32 %v345, %v426
        %v434 = vmul.f32 %v346, %v428
        %v435 = vmul.f32 %v347, %v430
        %v436 = vmul.f32 %v348, %v432
        %v437 = vmul.f32 %v349, %v426
        %v438 = vmul.f32 %v350, %v428
        %v439 = vmul.f32 %v351, %v430
        %v440 = vmul.f32 %v352, %v432
        %v441 = vmul.f32 %v378, %v426
        %v442 = vmul.f32 %v380, %v428
        %v443 = vmul.f32 %v382, %v430
        %v444 = vmul.f32 %v384, %v432
        %v445 = vmul.f32 %v437, %v353
        %v446 = vmul.f32 %v438, %v354
        %v447 = vmul.f32 %v439, %v355
        %v448 = vmul.f32 %v440, %v356
        %v449 = vmul.f32 %v441, %v349
        %v450 = vmul.f32 %v442, %v350
        %v451 = vmul.f32 %v443, %v351
        %v452 = vmul.f32 %v444, %v352
        %v453 = vsub.f32 %v445, %v449
        %v454 = vsub.f32 %v446, %v450
        %v455 = vsub.f32 %v447, %v451
        %v456 = vsub.f32 %v448, %v452
        %v457 = vmul.f32 %v441, %v345
        %v458 = vmul.f32 %v442, %v346
        %v459 = vmul.f32 %v443, %v347
        %v460 = vmul.f32 %v444, %v348
        %v461 = vmul.f32 %v433, %v353
        %v462 = vmul.f32 %v434, %v354
        %v463 = vmul.f32 %v435, %v355
        %v464 = vmul.f32 %v436, %v356
        %v465 = vsub.f32 %v457, %v461
        %v466 = vsub.f32 %v458, %v462
        %v467 = vsub.f32 %v459, %v463
        %v468 = vsub.f32 %v460, %v464
        %v469 = vmul.f32 %v433, %v349
        %v470 = vmul.f32 %v434, %v350
        %v471 = vmul.f32 %v435, %v351
        %v472 = vmul.f32 %v436, %v352
        %v473 = vmul.f32 %v437, %v345
        %v474 = vmul.f32 %v438, %v346
        %v475 = vmul.f32 %v439, %v347
        %v476 = vmul.f32 %v440, %v348
        %v477 = vsub.f32 %v469, %v473
        %v478 = vsub.f32 %v470, %v474
        %v479 = vsub.f32 %v471, %v475
        %v480 = vsub.f32 %v472, %v476
        %v481 = vmul.f32 %v433, %v261
        %v482 = vmul.f32 %v434, %v264
        %v483 = vmul.f32 %v435, %v267
        %v484 = vmul.f32 %v436, %v270
        %v485 = vmul.f32 %v453, %v262
        %v486 = vmul.f32 %v454, %v265
        %v487 = vmul.f32 %v455, %v268
        %v488 = vmul.f32 %v456, %v271
        %v489 = vadd.f32 %v481, %v485
        %v490 = vadd.f32 %v482, %v486
        %v491 = vadd.f32 %v483, %v487
        %v492 = vadd.f32 %v484, %v488
        %v493 = vmul.f32 %v345, %v263
        %v494 = vmul.f32 %v346, %v266
        %v495 = vmul.f32 %v347, %v269
        %v496 = vmul.f32 %v348, %v272
        %v497 = vadd.f32 %v489, %v493
        %v498 = vadd.f32 %v490, %v494
        %v499 = vadd.f32 %v491, %v495
        %v500 = vadd.f32 %v492, %v496
        %v501 = vmul.f32 %v437, %v261
        %v502 = vmul.f32 %v438, %v264
        %v503 = vmul.f32 %v439, %v267
        %v504 = vmul.f32 %v440, %v270
        %v505 = vmul.f32 %v465, %v262
        %v506 = vmul.f32 %v466, %v265
        %v507 = vmul.f32 %v467, %v268
        %v508 = vmul.f32 %v468, %v271
        %v509 = vadd.f32 %v501, %v505
        %v510 = vadd.f32 %v502, %v506
        %v511 = vadd.f32 %v503, %v507
        %v512 = vadd.f32 %v504, %v508
        %v513 = vmul.f32 %v349, %v263
        %v514 = vmul.f32 %v350, %v266
        %v515 = vmul.f32 %v351, %v269
        %v516 = vmul.f32 %v352, %v272
        %v517 = vadd.f32 %v509, %v513
        %v518 = vadd.f32 %v510, %v514
        %v519 = vadd.f32 %v511, %v515
        %v520 = vadd.f32 %v512, %v516
        %v521 = vmul.f32 %v441, %v261
        %v522 = vmul.f32 %v442, %v264
        %v523 = vmul.f32 %v443, %v267
        %v524 = vmul.f32 %v444, %v270
        %v525 = vmul.f32 %v477, %v262
        %v526 = vmul.f32 %v478, %v265
        %v527 = vmul.f32 %v479, %v268
        %v528 = vmul.f32 %v480, %v271
        %v529 = vadd.f32 %v521, %v525
        %v530 = vadd.f32 %v522, %v526
        %v531 = vadd.f32 %v523, %v527
        %v532 = vadd.f32 %v524, %v528
        %v533 = vmul.f32 %v353, %v263
        %v534 = vmul.f32 %v354, %v266
        %v535 = vmul.f32 %v355, %v269
        %v536 = vmul.f32 %v356, %v272
        %v537 = vadd.f32 %v529, %v533
        %v538 = vadd.f32 %v530, %v534
        %v539 = vadd.f32 %v531, %v535
        %v540 = vadd.f32 %v532, %v536
        %v541 = vmul.f32 %v433, %v497
        %v542 = vmul.f32 %v434, %v498
        %v543 = vmul.f32 %v435, %v499
        %v544 = vmul.f32 %v436, %v500
        %v545 = vmul.f32 %v437, %v517
        %v546 = vmul.f32 %v438, %v518
        %v547 = vmul.f32 %v439, %v519
        %v548 = vmul.f32 %v440, %v520
        %v549 = vadd.f32 %v541, %v545
        %v550 = vadd.f32 %v542, %v546
        %v551 = vadd.f32 %v543, %v547
        %v552 = vadd.f32 %v544, %v548
        %v553 = vmul.f32 %v453, %v497
        %v554 = vmul.f32 %v454, %v498
        %v555 = vmul.f32 %v455, %v499
        %v556 = vmul.f32 %v456, %v500
        %v557 = vmul.f32 %v465, %v517
        %v558 = vmul.f32 %v466, %v518
        %v559 = vmul.f32 %v467, %v519
        %v560 = vmul.f32 %v468, %v520
        %v561 = vadd.f32 %v553, %v557
        %v562 = vadd.f32 %v554, %v558
        %v563 = vadd.f32 %v555, %v559
        %v564 = vadd.f32 %v556, %v560
        %v565 = vmul.f32 %v345, %v497
        %v566 = vmul.f32 %v346, %v498
        %v567 = vmul.f32 %v347, %v499
        %v568 = vmul.f32 %v348, %v500
        %v569 = vmul.f32 %v349, %v517
        %v570 = vmul.f32 %v350, %v518
        %v571 = vmul.f32 %v351, %v519
        %v572 = vmul.f32 %v352, %v520
        %v573 = vadd.f32 %v565, %v569
        %v574 = vadd.f32 %v566, %v570
        %v575 = vadd.f32 %v567, %v571
        %v576 = vadd.f32 %v568, %v572
        %v577 = vmul.f32 %v437, %v497
        %v578 = vmul.f32 %v438, %v498
        %v579 = vmul.f32 %v439, %v499
        %v580 = vmul.f32 %v440, %v500
        %v581 = vmul.f32 %v433, %v517
        %v582 = vmul.f32 %v434, %v518
        %v583 = vmul.f32 %v435, %v519
        %v584 = vmul.f32 %v436, %v520
        %v585 = vsub.f32 %v577, %v581
        %v586 = vsub.f32 %v578, %v582
        %v587 = vsub.f32 %v579, %v583
        %v588 = vsub.f32 %v580, %v584
        %v589 = vmul.f32 %v465, %v497
        %v590 = vmul.f32 %v466, %v498
        %v591 = vmul.f32 %v467, %v499
        %v592 = vmul.f32 %v468, %v500
        %v593 = vmul.f32 %v453, %v517
        %v594 = vmul.f32 %v454, %v518
        %v595 = vmul.f32 %v455, %v519
        %v596 = vmul.f32 %v456, %v520
        %v597 = vsub.f32 %v589, %v593
        %v598 = vsub.f32 %v590, %v594
        %v599 = vsub.f32 %v591, %v595
        %v600 = vsub.f32 %v592, %v596
        %v601 = vmul.f32 %v349, %v497
        %v602 = vmul.f32 %v350, %v498
        %v603 = vmul.f32 %v351, %v499
        %v604 = vmul.f32 %v352, %v500
        %v605 = vmul.f32 %v345, %v517
        %v606 = vmul.f32 %v346, %v518
        %v607 = vmul.f32 %v347, %v519
        %v608 = vmul.f32 %v348, %v520
        %v609 = vsub.f32 %v601, %v605
        %v610 = vsub.f32 %v602, %v606
        %v611 = vsub.f32 %v603, %v607
        %v612 = vsub.f32 %v604, %v608
        %v613 = vmul.f32 %v441, %v537
        %v614 = vmul.f32 %v442, %v538
        %v615 = vmul.f32 %v443, %v539
        %v616 = vmul.f32 %v444, %v540
        %v617 = vmul.f32 %v477, %v537
        %v618 = vmul.f32 %v478, %v538
        %v619 = vmul.f32 %v479, %v539
        %v620 = vmul.f32 %v480, %v540
        %v621 = vmul.f32 %v353, %v537
        %v622 = vmul.f32 %v354, %v538
        %v623 = vmul.f32 %v355, %v539
        %v624 = vmul.f32 %v356, %v540
        %637 = vrot.lane.b32.xlu0 %v585, 8
        %v638 = vpop.permute.xlu0 %637
        %639 = vrot.lane.b32.xlu0 %v597, 8
        %v640 = vpop.permute.xlu0 %639
        %641 = vrot.lane.b32.xlu0 %v609, 8
        %v642 = vpop.permute.xlu0 %641
        %643 = vrot.lane.b32.xlu0 %v586, 8
        %v644 = vpop.permute.xlu0 %643
        %645 = vrot.lane.b32.xlu0 %v598, 8
        %v646 = vpop.permute.xlu0 %645
        %647 = vrot.lane.b32.xlu0 %v610, 8
        %v648 = vpop.permute.xlu0 %647
        %649 = vrot.lane.b32.xlu0 %v587, 8
        %v650 = vpop.permute.xlu0 %649
        %651 = vrot.lane.b32.xlu0 %v599, 8
        %v652 = vpop.permute.xlu0 %651
        %653 = vrot.lane.b32.xlu0 %v611, 8
        %v654 = vpop.permute.xlu0 %653
        %655 = vrot.lane.b32.xlu0 %v588, 8
        %v656 = vpop.permute.xlu0 %655
        %657 = vrot.lane.b32.xlu0 %v600, 8
        %v658 = vpop.permute.xlu0 %657
        %659 = vrot.lane.b32.xlu0 %v612, 8
        %v660 = vpop.permute.xlu0 %659
        %685 = vrot.lane.b32.xlu0 %v613, 16
        %v686 = vpop.permute.xlu0 %685
        %687 = vrot.lane.b32.xlu0 %v617, 16
        %v688 = vpop.permute.xlu0 %687
        %689 = vrot.lane.b32.xlu0 %v621, 16
        %v690 = vpop.permute.xlu0 %689
        %691 = vrot.lane.b32.xlu0 %v614, 16
        %v692 = vpop.permute.xlu0 %691
        %693 = vrot.lane.b32.xlu0 %v618, 16
        %v694 = vpop.permute.xlu0 %693
        %695 = vrot.lane.b32.xlu0 %v622, 16
        %v696 = vpop.permute.xlu0 %695
        %697 = vrot.lane.b32.xlu0 %v615, 16
        %v698 = vpop.permute.xlu0 %697
        %699 = vrot.lane.b32.xlu0 %v619, 16
        %v700 = vpop.permute.xlu0 %699
        %701 = vrot.lane.b32.xlu0 %v623, 16
        %v702 = vpop.permute.xlu0 %701
        %703 = vrot.lane.b32.xlu0 %v616, 16
        %v704 = vpop.permute.xlu0 %703
        %705 = vrot.lane.b32.xlu0 %v620, 16
        %v706 = vpop.permute.xlu0 %705
        %707 = vrot.lane.b32.xlu0 %v624, 16
        %v708 = vpop.permute.xlu0 %707
        %vm721 = vcmask 64512
        %v722 = vsel %vm721, %v549, %v638
        %v723 = vsel %vm721, %v561, %v640
        %v724 = vsel %vm721, %v573, %v642
        %v725 = vsel %vm721, %v550, %v644
        %v726 = vsel %vm721, %v562, %v646
        %v727 = vsel %vm721, %v574, %v648
        %v728 = vsel %vm721, %v551, %v650
        %v729 = vsel %vm721, %v563, %v652
        %v730 = vsel %vm721, %v575, %v654
        %v731 = vsel %vm721, %v552, %v656
        %v732 = vsel %vm721, %v564, %v658
        %v733 = vsel %vm721, %v576, %v660
        %vm734 = vcmask 130048
        %v735 = vsel %vm734, %v722, %v686
        %v736 = vsel %vm734, %v723, %v688
        %v737 = vsel %vm734, %v724, %v690
        %v738 = vsel %vm734, %v725, %v692
        %v739 = vsel %vm734, %v726, %v694
        %v740 = vsel %vm734, %v727, %v696
        %v741 = vsel %vm734, %v728, %v698
        %v742 = vsel %vm734, %v729, %v700
        %v743 = vsel %vm734, %v730, %v702
        %v744 = vsel %vm734, %v731, %v704
        %v745 = vsel %vm734, %v732, %v706
        %v746 = vsel %vm734, %v733, %v708
        %v747 = vld [vmem:[%s2] sm:$0xff]
        %v748 = vld [vmem:[%s2 + $0x8] sm:$0xff]
        %v749 = vld [vmem:[%s2 + $0x10] sm:$0xff]
        %vm750 = vcmask 195584
        %v752 = vsel %vm750, %v735, 0
        %v755 = vsel %vm750, %v736, 0
        %v758 = vsel %vm750, %v737, 0
        %v761 = vsel %vm750, %v738, 0
        %v764 = vsel %vm750, %v739, 0
        %v767 = vsel %vm750, %v740, 0
        %v770 = vsel %vm750, %v741, 0
        %v773 = vsel %vm750, %v742, 0
        %v776 = vsel %vm750, %v743, 0
        %v779 = vsel %vm750, %v744, 0
        %v782 = vsel %vm750, %v745, 0
        %v785 = vsel %vm750, %v746, 0
        %787 = vmatprep.subr.mxu0 0.0
        %v788 = vand.u32 %v747, 4294901760
        %789 = vmatpush1.msra.mxu0 %v788
        %790 = vmatprep.subr.mxu0 0.0
        %v791 = vand.u32 %v748, 4294901760
        %792 = vmatpush1.msra.mxu0 %v791
        %793 = vmatprep.subr.mxu0 0.0
        %v794 = vand.u32 %v749, 4294901760
        %795 = vmatpush1.msra.mxu0 %v794
        %796 = vmatprep.subr.mxu0 0.0
        %797 = vmatpush1.msra.mxu0 0.0
        %798 = vmatprep.subr.mxu0 0.0
        %799 = vmatpush1.msra.mxu0 0.0
        %800 = vmatprep.subr.mxu0 0.0
        %801 = vmatpush1.msra.mxu0 0.0
        %802 = vmatprep.subr.mxu0 0.0
        %803 = vmatpush1.msra.mxu0 0.0
        %804 = vmatprep.subr.mxu0 0.0
        %805 = vmatpush1.msra.mxu0 0.0
        %806 = vmatprep.subr.mxu0 0.0
        %807 = vmatpush1.msra.mxu0 0.0
        %808 = vmatprep.subr.mxu0 0.0
        %809 = vmatpush1.msra.mxu0 0.0
        %810 = vmatprep.subr.mxu0 0.0
        %811 = vmatpush1.msra.mxu0 0.0
        %812 = vmatprep.subr.mxu0 0.0
        %813 = vmatpush1.msra.mxu0 0.0
        %814 = vmatprep.subr.mxu0 0.0
        %815 = vmatpush1.msra.mxu0 0.0
        %816 = vmatprep.subr.mxu0 0.0
        %817 = vmatpush1.msra.mxu0 0.0
        %818 = vmatprep.subr.mxu0 0.0
        %819 = vmatpush1.msra.mxu0 0.0
        %820 = vmatprep.subr.mxu0 0.0
        %821 = vmatpush1.msra.mxu0 0.0
        %822 = vmatprep.subr.mxu0 0.0
        %823 = vmatpush1.msra.mxu0 0.0
        %824 = vmatprep.subr.mxu0 0.0
        %825 = vmatpush1.msra.mxu0 0.0
        %826 = vmatprep.subr.mxu0 0.0
        %827 = vmatpush1.msra.mxu0 0.0
        %828 = vmatprep.subr.mxu0 0.0
        %829 = vmatpush1.msra.mxu0 0.0
        %830 = vmatprep.subr.mxu0 0.0
        %831 = vmatpush1.msra.mxu0 0.0
        %832 = vmatprep.subr.mxu0 0.0
        %833 = vmatpush1.msra.mxu0 0.0
        %834 = vmatprep.subr.mxu0 0.0
        %835 = vmatpush1.msra.mxu0 0.0
        %836 = vmatprep.subr.mxu0 0.0
        %837 = vmatpush1.msra.mxu0 0.0
        %838 = vmatprep.subr.mxu0 0.0
        %839 = vmatpush1.msra.mxu0 0.0
        %840 = vmatprep.subr.mxu0 0.0
        %841 = vmatpush1.msra.mxu0 0.0
        %842 = vmatprep.subr.mxu0 0.0
        %843 = vmatpush1.msra.mxu0 0.0
        %844 = vmatprep.subr.mxu0 0.0
        %845 = vmatpush1.msra.mxu0 0.0
        %846 = vmatprep.subr.mxu0 0.0
        %847 = vmatpush1.msra.mxu0 0.0
        %848 = vmatprep.subr.mxu0 0.0
        %849 = vmatpush1.msra.mxu0 0.0
        %850 = vmatprep.subr.mxu0 0.0
        %851 = vmatpush1.msra.mxu0 0.0
        %852 = vmatprep.subr.mxu0 0.0
        %853 = vmatpush1.msra.mxu0 0.0
        %854 = vmatprep.mubr.f32.mxu0 0.0
        %v855 = vand.u32 %v752, 4294901760
        %v856 = vsub.f32 %v752, %v855
        %v857 = vand.u32 %v856, 4294901760
        %v858 = vsub.f32 %v856, %v857
        %v859 = vand.u32 %v858, 4294901760
        %860 = vmatmul.mubr.f32.gmra.mrb[0].mxu0 %v859
        %v861 = vpop.f32.mrb[0].mxu0
        %v862 = vadd.f32 0.0, %v861
        %v863 = vpop.f32.mrb[0].mxu0
        %864 = vmatprep.mubr.f32.mxu0 0.0
        %v865 = vand.u32 %v755, 4294901760
        %v866 = vsub.f32 %v755, %v865
        %v867 = vand.u32 %v866, 4294901760
        %v868 = vsub.f32 %v866, %v867
        %v869 = vand.u32 %v868, 4294901760
        %870 = vmatmul.mubr.f32.gmra.mrb[0].mxu0 %v869
        %v871 = vpop.f32.mrb[0].mxu0
        %v872 = vadd.f32 0.0, %v871
        %v873 = vpop.f32.mrb[0].mxu0
        %874 = vmatprep.mubr.f32.mxu0 0.0
        %v875 = vand.u32 %v758, 4294901760
        %v876 = vsub.f32 %v758, %v875
        %v877 = vand.u32 %v876, 4294901760
        %v878 = vsub.f32 %v876, %v877
        %v879 = vand.u32 %v878, 4294901760
        %880 = vmatmul.mubr.f32.gmra.mrb[0].mxu0 %v879
        %v881 = vpop.f32.mrb[0].mxu0
        %v882 = vadd.f32 0.0, %v881
        %v883 = vpop.f32.mrb[0].mxu0
        %884 = vmatprep.mubr.f32.mxu0 0.0
        %v885 = vand.u32 %v761, 4294901760
        %v886 = vsub.f32 %v761, %v885
        %v887 = vand.u32 %v886, 4294901760
        %v888 = vsub.f32 %v886, %v887
        %v889 = vand.u32 %v888, 4294901760
        %890 = vmatmul.mubr.f32.gmra.mrb[0].mxu0 %v889
        %v891 = vpop.f32.mrb[0].mxu0
        %v892 = vadd.f32 0.0, %v891
        %v893 = vpop.f32.mrb[0].mxu0
        %894 = vmatprep.mubr.f32.mxu0 0.0
        %v895 = vand.u32 %v764, 4294901760
        %v896 = vsub.f32 %v764, %v895
        %v897 = vand.u32 %v896, 4294901760
        %v898 = vsub.f32 %v896, %v897
        %v899 = vand.u32 %v898, 4294901760
        %900 = vmatmul.mubr.f32.gmra.mrb[0].mxu0 %v899
        %v901 = vpop.f32.mrb[0].mxu0
        %v902 = vadd.f32 0.0, %v901
        %v903 = vpop.f32.mrb[0].mxu0
        %904 = vmatprep.mubr.f32.mxu0 0.0
        %v905 = vand.u32 %v767, 4294901760
        %v906 = vsub.f32 %v767, %v905
        %v907 = vand.u32 %v906, 4294901760
        %v908 = vsub.f32 %v906, %v907
        %v909 = vand.u32 %v908, 4294901760
        %910 = vmatmul.mubr.f32.gmra.mrb[0].mxu0 %v909
        %v911 = vpop.f32.mrb[0].mxu0
        %v912 = vadd.f32 0.0, %v911
        %v913 = vpop.f32.mrb[0].mxu0
        %914 = vmatprep.mubr.f32.mxu0 0.0
        %v915 = vand.u32 %v770, 4294901760
        %v916 = vsub.f32 %v770, %v915
        %v917 = vand.u32 %v916, 4294901760
        %v918 = vsub.f32 %v916, %v917
        %v919 = vand.u32 %v918, 4294901760
        %920 = vmatmul.mubr.f32.gmra.mrb[0].mxu0 %v919
        %v921 = vpop.f32.mrb[0].mxu0
        %v922 = vadd.f32 0.0, %v921
        %v923 = vpop.f32.mrb[0].mxu0
        %924 = vmatprep.mubr.f32.mxu0 0.0
        %v925 = vand.u32 %v773, 4294901760
        %v926 = vsub.f32 %v773, %v925
        %v927 = vand.u32 %v926, 4294901760
        %v928 = vsub.f32 %v926, %v927
        %v929 = vand.u32 %v928, 4294901760
        %930 = vmatmul.mubr.f32.gmra.mrb[0].mxu0 %v929
        %v931 = vpop.f32.mrb[0].mxu0
        %v932 = vadd.f32 0.0, %v931
        %v933 = vpop.f32.mrb[0].mxu0
        %934 = vmatprep.mubr.f32.mxu0 0.0
        %v935 = vand.u32 %v776, 4294901760
        %v936 = vsub.f32 %v776, %v935
        %v937 = vand.u32 %v936, 4294901760
        %v938 = vsub.f32 %v936, %v937
        %v939 = vand.u32 %v938, 4294901760
        %940 = vmatmul.mubr.f32.gmra.mrb[0].mxu0 %v939
        %v941 = vpop.f32.mrb[0].mxu0
        %v942 = vadd.f32 0.0, %v941
        %v943 = vpop.f32.mrb[0].mxu0
        %944 = vmatprep.mubr.f32.mxu0 0.0
        %v945 = vand.u32 %v779, 4294901760
        %v946 = vsub.f32 %v779, %v945
        %v947 = vand.u32 %v946, 4294901760
        %v948 = vsub.f32 %v946, %v947
        %v949 = vand.u32 %v948, 4294901760
        %950 = vmatmul.mubr.f32.gmra.mrb[0].mxu0 %v949
        %v951 = vpop.f32.mrb[0].mxu0
        %v952 = vadd.f32 0.0, %v951
        %v953 = vpop.f32.mrb[0].mxu0
        %954 = vmatprep.mubr.f32.mxu0 0.0
        %v955 = vand.u32 %v782, 4294901760
        %v956 = vsub.f32 %v782, %v955
        %v957 = vand.u32 %v956, 4294901760
        %v958 = vsub.f32 %v956, %v957
        %v959 = vand.u32 %v958, 4294901760
        %960 = vmatmul.mubr.f32.gmra.mrb[0].mxu0 %v959
        %v961 = vpop.f32.mrb[0].mxu0
        %v962 = vadd.f32 0.0, %v961
        %v963 = vpop.f32.mrb[0].mxu0
        %964 = vmatprep.mubr.f32.mxu0 0.0
        %v965 = vand.u32 %v785, 4294901760
        %v966 = vsub.f32 %v785, %v965
        %v967 = vand.u32 %v966, 4294901760
        %v968 = vsub.f32 %v966, %v967
        %v969 = vand.u32 %v968, 4294901760
        %970 = vmatmul.mubr.f32.gmra.mrb[0].mxu0 %v969
        %v971 = vpop.f32.mrb[0].mxu0
        %v972 = vadd.f32 0.0, %v971
        %v973 = vpop.f32.mrb[0].mxu0
        %974 = vdwg.mxu0
        %975 = vmatprep.subr.mxu0 0.0
        %v976 = vand.u32 %v747, 4294901760
        %v977 = vsub.f32 %v747, %v976
        %v978 = vand.u32 %v977, 4294901760
        %v979 = vsub.f32 %v977, %v978
        %v980 = vand.u32 %v979, 4294901760
        %981 = vmatpush1.msra.mxu0 %v980
        %982 = vmatprep.subr.mxu0 0.0
        %v983 = vand.u32 %v748, 4294901760
        %v984 = vsub.f32 %v748, %v983
        %v985 = vand.u32 %v984, 4294901760
        %v986 = vsub.f32 %v984, %v985
        %v987 = vand.u32 %v986, 4294901760
        %988 = vmatpush1.msra.mxu0 %v987
        %989 = vmatprep.subr.mxu0 0.0
        %v990 = vand.u32 %v749, 4294901760
        %v991 = vsub.f32 %v749, %v990
        %v992 = vand.u32 %v991, 4294901760
        %v993 = vsub.f32 %v991, %v992
        %v994 = vand.u32 %v993, 4294901760
        %995 = vmatpush1.msra.mxu0 %v994
        %996 = vmatprep.subr.mxu0 0.0
        %997 = vmatpush1.msra.mxu0 0.0
        %998 = vmatprep.subr.mxu0 0.0
        %999 = vmatpush1.msra.mxu0 0.0
        %1000 = vmatprep.subr.mxu0 0.0
        %1001 = vmatpush1.msra.mxu0 0.0
        %1002 = vmatprep.subr.mxu0 0.0
        %1003 = vmatpush1.msra.mxu0 0.0
        %1004 = vmatprep.subr.mxu0 0.0
        %1005 = vmatpush1.msra.mxu0 0.0
        %1006 = vmatprep.subr.mxu0 0.0
        %1007 = vmatpush1.msra.mxu0 0.0
        %1008 = vmatprep.subr.mxu0 0.0
        %1009 = vmatpush1.msra.mxu0 0.0
        %1010 = vmatprep.subr.mxu0 0.0
        %1011 = vmatpush1.msra.mxu0 0.0
        %1012 = vmatprep.subr.mxu0 0.0
        %1013 = vmatpush1.msra.mxu0 0.0
        %1014 = vmatprep.subr.mxu0 0.0
        %1015 = vmatpush1.msra.mxu0 0.0
        %1016 = vmatprep.subr.mxu0 0.0
        %1017 = vmatpush1.msra.mxu0 0.0
        %1018 = vmatprep.subr.mxu0 0.0
        %1019 = vmatpush1.msra.mxu0 0.0
        %1020 = vmatprep.subr.mxu0 0.0
        %1021 = vmatpush1.msra.mxu0 0.0
        %1022 = vmatprep.subr.mxu0 0.0
        %1023 = vmatpush1.msra.mxu0 0.0
        %1024 = vmatprep.subr.mxu0 0.0
        %1025 = vmatpush1.msra.mxu0 0.0
        %1026 = vmatprep.subr.mxu0 0.0
        %1027 = vmatpush1.msra.mxu0 0.0
        %1028 = vmatprep.subr.mxu0 0.0
        %1029 = vmatpush1.msra.mxu0 0.0
        %1030 = vmatprep.subr.mxu0 0.0
        %1031 = vmatpush1.msra.mxu0 0.0
        %1032 = vmatprep.subr.mxu0 0.0
        %1033 = vmatpush1.msra.mxu0 0.0
        %1034 = vmatprep.subr.mxu0 0.0
        %1035 = vmatpush1.msra.mxu0 0.0
        %1036 = vmatprep.subr.mxu0 0.0
        %1037 = vmatpush1.msra.mxu0 0.0
        %1038 = vmatprep.subr.mxu0 0.0
        %1039 = vmatpush1.msra.mxu0 0.0
        %1040 = vmatprep.subr.mxu0 0.0
        %1041 = vmatpush1.msra.mxu0 0.0
        %1042 = vmatprep.subr.mxu0 0.0
        %1043 = vmatpush1.msra.mxu0 0.0
        %1044 = vmatprep.subr.mxu0 0.0
        %1045 = vmatpush1.msra.mxu0 0.0
        %1046 = vmatprep.subr.mxu0 0.0
        %1047 = vmatpush1.msra.mxu0 0.0
        %1048 = vmatprep.subr.mxu0 0.0
        %1049 = vmatpush1.msra.mxu0 0.0
        %1050 = vmatprep.subr.mxu0 0.0
        %1051 = vmatpush1.msra.mxu0 0.0
        %1052 = vmatprep.subr.mxu0 0.0
        %1053 = vmatpush1.msra.mxu0 0.0
        %1054 = vmatprep.mubr.f32.mxu0 0.0
        %v1055 = vand.u32 %v752, 4294901760
        %1056 = vmatmul.mubr.f32.gmra.mrb[0].mxu0 %v1055
        %v1057 = vpop.f32.mrb[0].mxu0
        %v1058 = vadd.f32 %v862, %v1057
        %v1059 = vpop.f32.mrb[0].mxu0
        %1060 = vmatprep.mubr.f32.mxu0 0.0
        %v1061 = vand.u32 %v755, 4294901760
        %1062 = vmatmul.mubr.f32.gmra.mrb[0].mxu0 %v1061
        %v1063 = vpop.f32.mrb[0].mxu0
        %v1064 = vadd.f32 %v872, %v1063
        %v1065 = vpop.f32.mrb[0].mxu0
        %1066 = vmatprep.mubr.f32.mxu0 0.0
        %v1067 = vand.u32 %v758, 4294901760
        %1068 = vmatmul.mubr.f32.gmra.mrb[0].mxu0 %v1067
        %v1069 = vpop.f32.mrb[0].mxu0
        %v1070 = vadd.f32 %v882, %v1069
        %v1071 = vpop.f32.mrb[0].mxu0
        %1072 = vmatprep.mubr.f32.mxu0 0.0
        %v1073 = vand.u32 %v761, 4294901760
        %1074 = vmatmul.mubr.f32.gmra.mrb[0].mxu0 %v1073
        %v1075 = vpop.f32.mrb[0].mxu0
        %v1076 = vadd.f32 %v892, %v1075
        %v1077 = vpop.f32.mrb[0].mxu0
        %1078 = vmatprep.mubr.f32.mxu0 0.0
        %v1079 = vand.u32 %v764, 4294901760
        %1080 = vmatmul.mubr.f32.gmra.mrb[0].mxu0 %v1079
        %v1081 = vpop.f32.mrb[0].mxu0
        %v1082 = vadd.f32 %v902, %v1081
        %v1083 = vpop.f32.mrb[0].mxu0
        %1084 = vmatprep.mubr.f32.mxu0 0.0
        %v1085 = vand.u32 %v767, 4294901760
        %1086 = vmatmul.mubr.f32.gmra.mrb[0].mxu0 %v1085
        %v1087 = vpop.f32.mrb[0].mxu0
        %v1088 = vadd.f32 %v912, %v1087
        %v1089 = vpop.f32.mrb[0].mxu0
        %1090 = vmatprep.mubr.f32.mxu0 0.0
        %v1091 = vand.u32 %v770, 4294901760
        %1092 = vmatmul.mubr.f32.gmra.mrb[0].mxu0 %v1091
        %v1093 = vpop.f32.mrb[0].mxu0
        %v1094 = vadd.f32 %v922, %v1093
        %v1095 = vpop.f32.mrb[0].mxu0
        %1096 = vmatprep.mubr.f32.mxu0 0.0
        %v1097 = vand.u32 %v773, 4294901760
        %1098 = vmatmul.mubr.f32.gmra.mrb[0].mxu0 %v1097
        %v1099 = vpop.f32.mrb[0].mxu0
        %v1100 = vadd.f32 %v932, %v1099
        %v1101 = vpop.f32.mrb[0].mxu0
        %1102 = vmatprep.mubr.f32.mxu0 0.0
        %v1103 = vand.u32 %v776, 4294901760
        %1104 = vmatmul.mubr.f32.gmra.mrb[0].mxu0 %v1103
        %v1105 = vpop.f32.mrb[0].mxu0
        %v1106 = vadd.f32 %v942, %v1105
        %v1107 = vpop.f32.mrb[0].mxu0
        %1108 = vmatprep.mubr.f32.mxu0 0.0
        %v1109 = vand.u32 %v779, 4294901760
        %1110 = vmatmul.mubr.f32.gmra.mrb[0].mxu0 %v1109
        %v1111 = vpop.f32.mrb[0].mxu0
        %v1112 = vadd.f32 %v952, %v1111
        %v1113 = vpop.f32.mrb[0].mxu0
        %1114 = vmatprep.mubr.f32.mxu0 0.0
        %v1115 = vand.u32 %v782, 4294901760
        %1116 = vmatmul.mubr.f32.gmra.mrb[0].mxu0 %v1115
        %v1117 = vpop.f32.mrb[0].mxu0
        %v1118 = vadd.f32 %v962, %v1117
        %v1119 = vpop.f32.mrb[0].mxu0
        %1120 = vmatprep.mubr.f32.mxu0 0.0
        %v1121 = vand.u32 %v785, 4294901760
        %1122 = vmatmul.mubr.f32.gmra.mrb[0].mxu0 %v1121
        %v1123 = vpop.f32.mrb[0].mxu0
        %v1124 = vadd.f32 %v972, %v1123
        %v1125 = vpop.f32.mrb[0].mxu0
        %1126 = vdwg.mxu0
        %1127 = vmatprep.subr.mxu0 0.0
        %v1128 = vand.u32 %v747, 4294901760
        %v1129 = vsub.f32 %v747, %v1128
        %1130 = vmatpush1.msra.mxu0 %v1129
        %1131 = vmatprep.subr.mxu0 0.0
        %v1132 = vand.u32 %v748, 4294901760
        %v1133 = vsub.f32 %v748, %v1132
        %1134 = vmatpush1.msra.mxu0 %v1133
        %1135 = vmatprep.subr.mxu0 0.0
        %v1136 = vand.u32 %v749, 4294901760
        %v1137 = vsub.f32 %v749, %v1136
        %1138 = vmatpush1.msra.mxu0 %v1137
        %1139 = vmatprep.subr.mxu0 0.0
        %1140 = vmatpush1.msra.mxu0 0.0
        %1141 = vmatprep.subr.mxu0 0.0
        %1142 = vmatpush1.msra.mxu0 0.0
        %1143 = vmatprep.subr.mxu0 0.0
        %1144 = vmatpush1.msra.mxu0 0.0
        %1145 = vmatprep.subr.mxu0 0.0
        %1146 = vmatpush1.msra.mxu0 0.0
        %1147 = vmatprep.subr.mxu0 0.0
        %1148 = vmatpush1.msra.mxu0 0.0
        %1149 = vmatprep.subr.mxu0 0.0
        %1150 = vmatpush1.msra.mxu0 0.0
        %1151 = vmatprep.subr.mxu0 0.0
        %1152 = vmatpush1.msra.mxu0 0.0
        %1153 = vmatprep.subr.mxu0 0.0
        %1154 = vmatpush1.msra.mxu0 0.0
        %1155 = vmatprep.subr.mxu0 0.0
        %1156 = vmatpush1.msra.mxu0 0.0
        %1157 = vmatprep.subr.mxu0 0.0
        %1158 = vmatpush1.msra.mxu0 0.0
        %1159 = vmatprep.subr.mxu0 0.0
        %1160 = vmatpush1.msra.mxu0 0.0
        %1161 = vmatprep.subr.mxu0 0.0
        %1162 = vmatpush1.msra.mxu0 0.0
        %1163 = vmatprep.subr.mxu0 0.0
        %1164 = vmatpush1.msra.mxu0 0.0
        %1165 = vmatprep.subr.mxu0 0.0
        %1166 = vmatpush1.msra.mxu0 0.0
        %1167 = vmatprep.subr.mxu0 0.0
        %1168 = vmatpush1.msra.mxu0 0.0
        %1169 = vmatprep.subr.mxu0 0.0
        %1170 = vmatpush1.msra.mxu0 0.0
        %1171 = vmatprep.subr.mxu0 0.0
        %1172 = vmatpush1.msra.mxu0 0.0
        %1173 = vmatprep.subr.mxu0 0.0
        %1174 = vmatpush1.msra.mxu0 0.0
        %1175 = vmatprep.subr.mxu0 0.0
        %1176 = vmatpush1.msra.mxu0 0.0
        %1177 = vmatprep.subr.mxu0 0.0
        %1178 = vmatpush1.msra.mxu0 0.0
        %1179 = vmatprep.subr.mxu0 0.0
        %1180 = vmatpush1.msra.mxu0 0.0
        %1181 = vmatprep.subr.mxu0 0.0
        %1182 = vmatpush1.msra.mxu0 0.0
        %1183 = vmatprep.subr.mxu0 0.0
        %1184 = vmatpush1.msra.mxu0 0.0
        %1185 = vmatprep.subr.mxu0 0.0
        %1186 = vmatpush1.msra.mxu0 0.0
        %1187 = vmatprep.subr.mxu0 0.0
        %1188 = vmatpush1.msra.mxu0 0.0
        %1189 = vmatprep.subr.mxu0 0.0
        %1190 = vmatpush1.msra.mxu0 0.0
        %1191 = vmatprep.subr.mxu0 0.0
        %1192 = vmatpush1.msra.mxu0 0.0
        %1193 = vmatprep.subr.mxu0 0.0
        %1194 = vmatpush1.msra.mxu0 0.0
        %1195 = vmatprep.subr.mxu0 0.0
        %1196 = vmatpush1.msra.mxu0 0.0
        %1197 = vmatprep.mubr.f32.mxu0 0.0
        %v1198 = vand.u32 %v752, 4294901760
        %v1199 = vsub.f32 %v752, %v1198
        %1200 = vmatmul.mubr.f32.gmra.mrb[0].mxu0 %v1199
        %v1201 = vpop.f32.mrb[0].mxu0
        %v1202 = vadd.f32 %v1058, %v1201
        %v1203 = vpop.f32.mrb[0].mxu0
        %1204 = vmatprep.mubr.f32.mxu0 0.0
        %v1205 = vand.u32 %v755, 4294901760
        %v1206 = vsub.f32 %v755, %v1205
        %1207 = vmatmul.mubr.f32.gmra.mrb[0].mxu0 %v1206
        %v1208 = vpop.f32.mrb[0].mxu0
        %v1209 = vadd.f32 %v1064, %v1208
        %v1210 = vpop.f32.mrb[0].mxu0
        %1211 = vmatprep.mubr.f32.mxu0 0.0
        %v1212 = vand.u32 %v758, 4294901760
        %v1213 = vsub.f32 %v758, %v1212
        %1214 = vmatmul.mubr.f32.gmra.mrb[0].mxu0 %v1213
        %v1215 = vpop.f32.mrb[0].mxu0
        %v1216 = vadd.f32 %v1070, %v1215
        %v1217 = vpop.f32.mrb[0].mxu0
        %1218 = vmatprep.mubr.f32.mxu0 0.0
        %v1219 = vand.u32 %v761, 4294901760
        %v1220 = vsub.f32 %v761, %v1219
        %1221 = vmatmul.mubr.f32.gmra.mrb[0].mxu0 %v1220
        %v1222 = vpop.f32.mrb[0].mxu0
        %v1223 = vadd.f32 %v1076, %v1222
        %v1224 = vpop.f32.mrb[0].mxu0
        %1225 = vmatprep.mubr.f32.mxu0 0.0
        %v1226 = vand.u32 %v764, 4294901760
        %v1227 = vsub.f32 %v764, %v1226
        %1228 = vmatmul.mubr.f32.gmra.mrb[0].mxu0 %v1227
        %v1229 = vpop.f32.mrb[0].mxu0
        %v1230 = vadd.f32 %v1082, %v1229
        %v1231 = vpop.f32.mrb[0].mxu0
        %1232 = vmatprep.mubr.f32.mxu0 0.0
        %v1233 = vand.u32 %v767, 4294901760
        %v1234 = vsub.f32 %v767, %v1233
        %1235 = vmatmul.mubr.f32.gmra.mrb[0].mxu0 %v1234
        %v1236 = vpop.f32.mrb[0].mxu0
        %v1237 = vadd.f32 %v1088, %v1236
        %v1238 = vpop.f32.mrb[0].mxu0
        %1239 = vmatprep.mubr.f32.mxu0 0.0
        %v1240 = vand.u32 %v770, 4294901760
        %v1241 = vsub.f32 %v770, %v1240
        %1242 = vmatmul.mubr.f32.gmra.mrb[0].mxu0 %v1241
        %v1243 = vpop.f32.mrb[0].mxu0
        %v1244 = vadd.f32 %v1094, %v1243
        %v1245 = vpop.f32.mrb[0].mxu0
        %1246 = vmatprep.mubr.f32.mxu0 0.0
        %v1247 = vand.u32 %v773, 4294901760
        %v1248 = vsub.f32 %v773, %v1247
        %1249 = vmatmul.mubr.f32.gmra.mrb[0].mxu0 %v1248
        %v1250 = vpop.f32.mrb[0].mxu0
        %v1251 = vadd.f32 %v1100, %v1250
        %v1252 = vpop.f32.mrb[0].mxu0
        %1253 = vmatprep.mubr.f32.mxu0 0.0
        %v1254 = vand.u32 %v776, 4294901760
        %v1255 = vsub.f32 %v776, %v1254
        %1256 = vmatmul.mubr.f32.gmra.mrb[0].mxu0 %v1255
        %v1257 = vpop.f32.mrb[0].mxu0
        %v1258 = vadd.f32 %v1106, %v1257
        %v1259 = vpop.f32.mrb[0].mxu0
        %1260 = vmatprep.mubr.f32.mxu0 0.0
        %v1261 = vand.u32 %v779, 4294901760
        %v1262 = vsub.f32 %v779, %v1261
        %1263 = vmatmul.mubr.f32.gmra.mrb[0].mxu0 %v1262
        %v1264 = vpop.f32.mrb[0].mxu0
        %v1265 = vadd.f32 %v1112, %v1264
        %v1266 = vpop.f32.mrb[0].mxu0
        %1267 = vmatprep.mubr.f32.mxu0 0.0
        %v1268 = vand.u32 %v782, 4294901760
        %v1269 = vsub.f32 %v782, %v1268
        %1270 = vmatmul.mubr.f32.gmra.mrb[0].mxu0 %v1269
        %v1271 = vpop.f32.mrb[0].mxu0
        %v1272 = vadd.f32 %v1118, %v1271
        %v1273 = vpop.f32.mrb[0].mxu0
        %1274 = vmatprep.mubr.f32.mxu0 0.0
        %v1275 = vand.u32 %v785, 4294901760
        %v1276 = vsub.f32 %v785, %v1275
        %1277 = vmatmul.mubr.f32.gmra.mrb[0].mxu0 %v1276
        %v1278 = vpop.f32.mrb[0].mxu0
        %v1279 = vadd.f32 %v1124, %v1278
        %v1280 = vpop.f32.mrb[0].mxu0
        %1281 = vdwg.mxu0
        %1282 = vmatprep.subr.mxu0 0.0
        %v1283 = vand.u32 %v747, 4294901760
        %1284 = vmatpush1.msra.mxu0 %v1283
        %1285 = vmatprep.subr.mxu0 0.0
        %v1286 = vand.u32 %v748, 4294901760
        %1287 = vmatpush1.msra.mxu0 %v1286
        %1288 = vmatprep.subr.mxu0 0.0
        %v1289 = vand.u32 %v749, 4294901760
        %1290 = vmatpush1.msra.mxu0 %v1289
        %1291 = vmatprep.subr.mxu0 0.0
        %1292 = vmatpush1.msra.mxu0 0.0
        %1293 = vmatprep.subr.mxu0 0.0
        %1294 = vmatpush1.msra.mxu0 0.0
        %1295 = vmatprep.subr.mxu0 0.0
        %1296 = vmatpush1.msra.mxu0 0.0
        %1297 = vmatprep.subr.mxu0 0.0
        %1298 = vmatpush1.msra.mxu0 0.0
        %1299 = vmatprep.subr.mxu0 0.0
        %1300 = vmatpush1.msra.mxu0 0.0
        %1301 = vmatprep.subr.mxu0 0.0
        %1302 = vmatpush1.msra.mxu0 0.0
        %1303 = vmatprep.subr.mxu0 0.0
        %1304 = vmatpush1.msra.mxu0 0.0
        %1305 = vmatprep.subr.mxu0 0.0
        %1306 = vmatpush1.msra.mxu0 0.0
        %1307 = vmatprep.subr.mxu0 0.0
        %1308 = vmatpush1.msra.mxu0 0.0
        %1309 = vmatprep.subr.mxu0 0.0
        %1310 = vmatpush1.msra.mxu0 0.0
        %1311 = vmatprep.subr.mxu0 0.0
        %1312 = vmatpush1.msra.mxu0 0.0
        %1313 = vmatprep.subr.mxu0 0.0
        %1314 = vmatpush1.msra.mxu0 0.0
        %1315 = vmatprep.subr.mxu0 0.0
        %1316 = vmatpush1.msra.mxu0 0.0
        %1317 = vmatprep.subr.mxu0 0.0
        %1318 = vmatpush1.msra.mxu0 0.0
        %1319 = vmatprep.subr.mxu0 0.0
        %1320 = vmatpush1.msra.mxu0 0.0
        %1321 = vmatprep.subr.mxu0 0.0
        %1322 = vmatpush1.msra.mxu0 0.0
        %1323 = vmatprep.subr.mxu0 0.0
        %1324 = vmatpush1.msra.mxu0 0.0
        %1325 = vmatprep.subr.mxu0 0.0
        %1326 = vmatpush1.msra.mxu0 0.0
        %1327 = vmatprep.subr.mxu0 0.0
        %1328 = vmatpush1.msra.mxu0 0.0
        %1329 = vmatprep.subr.mxu0 0.0
        %1330 = vmatpush1.msra.mxu0 0.0
        %1331 = vmatprep.subr.mxu0 0.0
        %1332 = vmatpush1.msra.mxu0 0.0
        %1333 = vmatprep.subr.mxu0 0.0
        %1334 = vmatpush1.msra.mxu0 0.0
        %1335 = vmatprep.subr.mxu0 0.0
        %1336 = vmatpush1.msra.mxu0 0.0
        %1337 = vmatprep.subr.mxu0 0.0
        %1338 = vmatpush1.msra.mxu0 0.0
        %1339 = vmatprep.subr.mxu0 0.0
        %1340 = vmatpush1.msra.mxu0 0.0
        %1341 = vmatprep.subr.mxu0 0.0
        %1342 = vmatpush1.msra.mxu0 0.0
        %1343 = vmatprep.subr.mxu0 0.0
        %1344 = vmatpush1.msra.mxu0 0.0
        %1345 = vmatprep.subr.mxu0 0.0
        %1346 = vmatpush1.msra.mxu0 0.0
        %1347 = vmatprep.subr.mxu0 0.0
        %1348 = vmatpush1.msra.mxu0 0.0
        %1349 = vmatprep.mubr.f32.mxu0 0.0
        %v1350 = vand.u32 %v752, 4294901760
        %v1351 = vsub.f32 %v752, %v1350
        %v1352 = vand.u32 %v1351, 4294901760
        %1353 = vmatmul.mubr.f32.gmra.mrb[0].mxu0 %v1352
        %v1354 = vpop.f32.mrb[0].mxu0
        %v1355 = vadd.f32 %v1202, %v1354
        %v1356 = vpop.f32.mrb[0].mxu0
        %1357 = vmatprep.mubr.f32.mxu0 0.0
        %v1358 = vand.u32 %v755, 4294901760
        %v1359 = vsub.f32 %v755, %v1358
        %v1360 = vand.u32 %v1359, 4294901760
        %1361 = vmatmul.mubr.f32.gmra.mrb[0].mxu0 %v1360
        %v1362 = vpop.f32.mrb[0].mxu0
        %v1363 = vadd.f32 %v1209, %v1362
        %v1364 = vpop.f32.mrb[0].mxu0
        %1365 = vmatprep.mubr.f32.mxu0 0.0
        %v1366 = vand.u32 %v758, 4294901760
        %v1367 = vsub.f32 %v758, %v1366
        %v1368 = vand.u32 %v1367, 4294901760
        %1369 = vmatmul.mubr.f32.gmra.mrb[0].mxu0 %v1368
        %v1370 = vpop.f32.mrb[0].mxu0
        %v1371 = vadd.f32 %v1216, %v1370
        %v1372 = vpop.f32.mrb[0].mxu0
        %1373 = vmatprep.mubr.f32.mxu0 0.0
        %v1374 = vand.u32 %v761, 4294901760
        %v1375 = vsub.f32 %v761, %v1374
        %v1376 = vand.u32 %v1375, 4294901760
        %1377 = vmatmul.mubr.f32.gmra.mrb[0].mxu0 %v1376
        %v1378 = vpop.f32.mrb[0].mxu0
        %v1379 = vadd.f32 %v1223, %v1378
        %v1380 = vpop.f32.mrb[0].mxu0
        %1381 = vmatprep.mubr.f32.mxu0 0.0
        %v1382 = vand.u32 %v764, 4294901760
        %v1383 = vsub.f32 %v764, %v1382
        %v1384 = vand.u32 %v1383, 4294901760
        %1385 = vmatmul.mubr.f32.gmra.mrb[0].mxu0 %v1384
        %v1386 = vpop.f32.mrb[0].mxu0
        %v1387 = vadd.f32 %v1230, %v1386
        %v1388 = vpop.f32.mrb[0].mxu0
        %1389 = vmatprep.mubr.f32.mxu0 0.0
        %v1390 = vand.u32 %v767, 4294901760
        %v1391 = vsub.f32 %v767, %v1390
        %v1392 = vand.u32 %v1391, 4294901760
        %1393 = vmatmul.mubr.f32.gmra.mrb[0].mxu0 %v1392
        %v1394 = vpop.f32.mrb[0].mxu0
        %v1395 = vadd.f32 %v1237, %v1394
        %v1396 = vpop.f32.mrb[0].mxu0
        %1397 = vmatprep.mubr.f32.mxu0 0.0
        %v1398 = vand.u32 %v770, 4294901760
        %v1399 = vsub.f32 %v770, %v1398
        %v1400 = vand.u32 %v1399, 4294901760
        %1401 = vmatmul.mubr.f32.gmra.mrb[0].mxu0 %v1400
        %v1402 = vpop.f32.mrb[0].mxu0
        %v1403 = vadd.f32 %v1244, %v1402
        %v1404 = vpop.f32.mrb[0].mxu0
        %1405 = vmatprep.mubr.f32.mxu0 0.0
        %v1406 = vand.u32 %v773, 4294901760
        %v1407 = vsub.f32 %v773, %v1406
        %v1408 = vand.u32 %v1407, 4294901760
        %1409 = vmatmul.mubr.f32.gmra.mrb[0].mxu0 %v1408
        %v1410 = vpop.f32.mrb[0].mxu0
        %v1411 = vadd.f32 %v1251, %v1410
        %v1412 = vpop.f32.mrb[0].mxu0
        %1413 = vmatprep.mubr.f32.mxu0 0.0
        %v1414 = vand.u32 %v776, 4294901760
        %v1415 = vsub.f32 %v776, %v1414
        %v1416 = vand.u32 %v1415, 4294901760
        %1417 = vmatmul.mubr.f32.gmra.mrb[0].mxu0 %v1416
        %v1418 = vpop.f32.mrb[0].mxu0
        %v1419 = vadd.f32 %v1258, %v1418
        %v1420 = vpop.f32.mrb[0].mxu0
        %1421 = vmatprep.mubr.f32.mxu0 0.0
        %v1422 = vand.u32 %v779, 4294901760
        %v1423 = vsub.f32 %v779, %v1422
        %v1424 = vand.u32 %v1423, 4294901760
        %1425 = vmatmul.mubr.f32.gmra.mrb[0].mxu0 %v1424
        %v1426 = vpop.f32.mrb[0].mxu0
        %v1427 = vadd.f32 %v1265, %v1426
        %v1428 = vpop.f32.mrb[0].mxu0
        %1429 = vmatprep.mubr.f32.mxu0 0.0
        %v1430 = vand.u32 %v782, 4294901760
        %v1431 = vsub.f32 %v782, %v1430
        %v1432 = vand.u32 %v1431, 4294901760
        %1433 = vmatmul.mubr.f32.gmra.mrb[0].mxu0 %v1432
        %v1434 = vpop.f32.mrb[0].mxu0
        %v1435 = vadd.f32 %v1272, %v1434
        %v1436 = vpop.f32.mrb[0].mxu0
        %1437 = vmatprep.mubr.f32.mxu0 0.0
        %v1438 = vand.u32 %v785, 4294901760
        %v1439 = vsub.f32 %v785, %v1438
        %v1440 = vand.u32 %v1439, 4294901760
        %1441 = vmatmul.mubr.f32.gmra.mrb[0].mxu0 %v1440
        %v1442 = vpop.f32.mrb[0].mxu0
        %v1443 = vadd.f32 %v1279, %v1442
        %v1444 = vpop.f32.mrb[0].mxu0
        %1445 = vdwg.mxu0
        %1446 = vmatprep.subr.mxu0 0.0
        %v1447 = vand.u32 %v747, 4294901760
        %v1448 = vsub.f32 %v747, %v1447
        %v1449 = vand.u32 %v1448, 4294901760
        %1450 = vmatpush1.msra.mxu0 %v1449
        %1451 = vmatprep.subr.mxu0 0.0
        %v1452 = vand.u32 %v748, 4294901760
        %v1453 = vsub.f32 %v748, %v1452
        %v1454 = vand.u32 %v1453, 4294901760
        %1455 = vmatpush1.msra.mxu0 %v1454
        %1456 = vmatprep.subr.mxu0 0.0
        %v1457 = vand.u32 %v749, 4294901760
        %v1458 = vsub.f32 %v749, %v1457
        %v1459 = vand.u32 %v1458, 4294901760
        %1460 = vmatpush1.msra.mxu0 %v1459
        %1461 = vmatprep.subr.mxu0 0.0
        %1462 = vmatpush1.msra.mxu0 0.0
        %1463 = vmatprep.subr.mxu0 0.0
        %1464 = vmatpush1.msra.mxu0 0.0
        %1465 = vmatprep.subr.mxu0 0.0
        %1466 = vmatpush1.msra.mxu0 0.0
        %1467 = vmatprep.subr.mxu0 0.0
        %1468 = vmatpush1.msra.mxu0 0.0
        %1469 = vmatprep.subr.mxu0 0.0
        %1470 = vmatpush1.msra.mxu0 0.0
        %1471 = vmatprep.subr.mxu0 0.0
        %1472 = vmatpush1.msra.mxu0 0.0
        %1473 = vmatprep.subr.mxu0 0.0
        %1474 = vmatpush1.msra.mxu0 0.0
        %1475 = vmatprep.subr.mxu0 0.0
        %1476 = vmatpush1.msra.mxu0 0.0
        %1477 = vmatprep.subr.mxu0 0.0
        %1478 = vmatpush1.msra.mxu0 0.0
        %1479 = vmatprep.subr.mxu0 0.0
        %1480 = vmatpush1.msra.mxu0 0.0
        %1481 = vmatprep.subr.mxu0 0.0
        %1482 = vmatpush1.msra.mxu0 0.0
        %1483 = vmatprep.subr.mxu0 0.0
        %1484 = vmatpush1.msra.mxu0 0.0
        %1485 = vmatprep.subr.mxu0 0.0
        %1486 = vmatpush1.msra.mxu0 0.0
        %1487 = vmatprep.subr.mxu0 0.0
        %1488 = vmatpush1.msra.mxu0 0.0
        %1489 = vmatprep.subr.mxu0 0.0
        %1490 = vmatpush1.msra.mxu0 0.0
        %1491 = vmatprep.subr.mxu0 0.0
        %1492 = vmatpush1.msra.mxu0 0.0
        %1493 = vmatprep.subr.mxu0 0.0
        %1494 = vmatpush1.msra.mxu0 0.0
        %1495 = vmatprep.subr.mxu0 0.0
        %1496 = vmatpush1.msra.mxu0 0.0
        %1497 = vmatprep.subr.mxu0 0.0
        %1498 = vmatpush1.msra.mxu0 0.0
        %1499 = vmatprep.subr.mxu0 0.0
        %1500 = vmatpush1.msra.mxu0 0.0
        %1501 = vmatprep.subr.mxu0 0.0
        %1502 = vmatpush1.msra.mxu0 0.0
        %1503 = vmatprep.subr.mxu0 0.0
        %1504 = vmatpush1.msra.mxu0 0.0
        %1505 = vmatprep.subr.mxu0 0.0
        %1506 = vmatpush1.msra.mxu0 0.0
        %1507 = vmatprep.subr.mxu0 0.0
        %1508 = vmatpush1.msra.mxu0 0.0
        %1509 = vmatprep.subr.mxu0 0.0
        %1510 = vmatpush1.msra.mxu0 0.0
        %1511 = vmatprep.subr.mxu0 0.0
        %1512 = vmatpush1.msra.mxu0 0.0
        %1513 = vmatprep.subr.mxu0 0.0
        %1514 = vmatpush1.msra.mxu0 0.0
        %1515 = vmatprep.subr.mxu0 0.0
        %1516 = vmatpush1.msra.mxu0 0.0
        %1517 = vmatprep.subr.mxu0 0.0
        %1518 = vmatpush1.msra.mxu0 0.0
        %1519 = vmatprep.mubr.f32.mxu0 0.0
        %v1520 = vand.u32 %v752, 4294901760
        %1521 = vmatmul.mubr.f32.gmra.mrb[0].mxu0 %v1520
        %v1522 = vpop.f32.mrb[0].mxu0
        %v1523 = vadd.f32 %v1355, %v1522
        %v1524 = vpop.f32.mrb[0].mxu0
        %1525 = vmatprep.mubr.f32.mxu0 0.0
        %v1526 = vand.u32 %v755, 4294901760
        %1527 = vmatmul.mubr.f32.gmra.mrb[0].mxu0 %v1526
        %v1528 = vpop.f32.mrb[0].mxu0
        %v1529 = vadd.f32 %v1363, %v1528
        %v1530 = vpop.f32.mrb[0].mxu0
        %1531 = vmatprep.mubr.f32.mxu0 0.0
        %v1532 = vand.u32 %v758, 4294901760
        %1533 = vmatmul.mubr.f32.gmra.mrb[0].mxu0 %v1532
        %v1534 = vpop.f32.mrb[0].mxu0
        %v1535 = vadd.f32 %v1371, %v1534
        %v1536 = vpop.f32.mrb[0].mxu0
        %1537 = vmatprep.mubr.f32.mxu0 0.0
        %v1538 = vand.u32 %v761, 4294901760
        %1539 = vmatmul.mubr.f32.gmra.mrb[0].mxu0 %v1538
        %v1540 = vpop.f32.mrb[0].mxu0
        %v1541 = vadd.f32 %v1379, %v1540
        %v1542 = vpop.f32.mrb[0].mxu0
        %1543 = vmatprep.mubr.f32.mxu0 0.0
        %v1544 = vand.u32 %v764, 4294901760
        %1545 = vmatmul.mubr.f32.gmra.mrb[0].mxu0 %v1544
        %v1546 = vpop.f32.mrb[0].mxu0
        %v1547 = vadd.f32 %v1387, %v1546
        %v1548 = vpop.f32.mrb[0].mxu0
        %1549 = vmatprep.mubr.f32.mxu0 0.0
        %v1550 = vand.u32 %v767, 4294901760
        %1551 = vmatmul.mubr.f32.gmra.mrb[0].mxu0 %v1550
        %v1552 = vpop.f32.mrb[0].mxu0
        %v1553 = vadd.f32 %v1395, %v1552
        %v1554 = vpop.f32.mrb[0].mxu0
        %1555 = vmatprep.mubr.f32.mxu0 0.0
        %v1556 = vand.u32 %v770, 4294901760
        %1557 = vmatmul.mubr.f32.gmra.mrb[0].mxu0 %v1556
        %v1558 = vpop.f32.mrb[0].mxu0
        %v1559 = vadd.f32 %v1403, %v1558
        %v1560 = vpop.f32.mrb[0].mxu0
        %1561 = vmatprep.mubr.f32.mxu0 0.0
        %v1562 = vand.u32 %v773, 4294901760
        %1563 = vmatmul.mubr.f32.gmra.mrb[0].mxu0 %v1562
        %v1564 = vpop.f32.mrb[0].mxu0
        %v1565 = vadd.f32 %v1411, %v1564
        %v1566 = vpop.f32.mrb[0].mxu0
        %1567 = vmatprep.mubr.f32.mxu0 0.0
        %v1568 = vand.u32 %v776, 4294901760
        %1569 = vmatmul.mubr.f32.gmra.mrb[0].mxu0 %v1568
        %v1570 = vpop.f32.mrb[0].mxu0
        %v1571 = vadd.f32 %v1419, %v1570
        %v1572 = vpop.f32.mrb[0].mxu0
        %1573 = vmatprep.mubr.f32.mxu0 0.0
        %v1574 = vand.u32 %v779, 4294901760
        %1575 = vmatmul.mubr.f32.gmra.mrb[0].mxu0 %v1574
        %v1576 = vpop.f32.mrb[0].mxu0
        %v1577 = vadd.f32 %v1427, %v1576
        %v1578 = vpop.f32.mrb[0].mxu0
        %1579 = vmatprep.mubr.f32.mxu0 0.0
        %v1580 = vand.u32 %v782, 4294901760
        %1581 = vmatmul.mubr.f32.gmra.mrb[0].mxu0 %v1580
        %v1582 = vpop.f32.mrb[0].mxu0
        %v1583 = vadd.f32 %v1435, %v1582
        %v1584 = vpop.f32.mrb[0].mxu0
        %1585 = vmatprep.mubr.f32.mxu0 0.0
        %v1586 = vand.u32 %v785, 4294901760
        %1587 = vmatmul.mubr.f32.gmra.mrb[0].mxu0 %v1586
        %v1588 = vpop.f32.mrb[0].mxu0
        %v1589 = vadd.f32 %v1443, %v1588
        %v1590 = vpop.f32.mrb[0].mxu0
        %1591 = vdwg.mxu0
        %1592 = vmatprep.subr.mxu0 0.0
        %v1593 = vand.u32 %v747, 4294901760
        %1594 = vmatpush1.msra.mxu0 %v1593
        %1595 = vmatprep.subr.mxu0 0.0
        %v1596 = vand.u32 %v748, 4294901760
        %1597 = vmatpush1.msra.mxu0 %v1596
        %1598 = vmatprep.subr.mxu0 0.0
        %v1599 = vand.u32 %v749, 4294901760
        %1600 = vmatpush1.msra.mxu0 %v1599
        %1601 = vmatprep.subr.mxu0 0.0
        %1602 = vmatpush1.msra.mxu0 0.0
        %1603 = vmatprep.subr.mxu0 0.0
        %1604 = vmatpush1.msra.mxu0 0.0
        %1605 = vmatprep.subr.mxu0 0.0
        %1606 = vmatpush1.msra.mxu0 0.0
        %1607 = vmatprep.subr.mxu0 0.0
        %1608 = vmatpush1.msra.mxu0 0.0
        %1609 = vmatprep.subr.mxu0 0.0
        %1610 = vmatpush1.msra.mxu0 0.0
        %1611 = vmatprep.subr.mxu0 0.0
        %1612 = vmatpush1.msra.mxu0 0.0
        %1613 = vmatprep.subr.mxu0 0.0
        %1614 = vmatpush1.msra.mxu0 0.0
        %1615 = vmatprep.subr.mxu0 0.0
        %1616 = vmatpush1.msra.mxu0 0.0
        %1617 = vmatprep.subr.mxu0 0.0
        %1618 = vmatpush1.msra.mxu0 0.0
        %1619 = vmatprep.subr.mxu0 0.0
        %1620 = vmatpush1.msra.mxu0 0.0
        %1621 = vmatprep.subr.mxu0 0.0
        %1622 = vmatpush1.msra.mxu0 0.0
        %1623 = vmatprep.subr.mxu0 0.0
        %1624 = vmatpush1.msra.mxu0 0.0
        %1625 = vmatprep.subr.mxu0 0.0
        %1626 = vmatpush1.msra.mxu0 0.0
        %1627 = vmatprep.subr.mxu0 0.0
        %1628 = vmatpush1.msra.mxu0 0.0
        %1629 = vmatprep.subr.mxu0 0.0
        %1630 = vmatpush1.msra.mxu0 0.0
        %1631 = vmatprep.subr.mxu0 0.0
        %1632 = vmatpush1.msra.mxu0 0.0
        %1633 = vmatprep.subr.mxu0 0.0
        %1634 = vmatpush1.msra.mxu0 0.0
        %1635 = vmatprep.subr.mxu0 0.0
        %1636 = vmatpush1.msra.mxu0 0.0
        %1637 = vmatprep.subr.mxu0 0.0
        %1638 = vmatpush1.msra.mxu0 0.0
        %1639 = vmatprep.subr.mxu0 0.0
        %1640 = vmatpush1.msra.mxu0 0.0
        %1641 = vmatprep.subr.mxu0 0.0
        %1642 = vmatpush1.msra.mxu0 0.0
        %1643 = vmatprep.subr.mxu0 0.0
        %1644 = vmatpush1.msra.mxu0 0.0
        %1645 = vmatprep.subr.mxu0 0.0
        %1646 = vmatpush1.msra.mxu0 0.0
        %1647 = vmatprep.subr.mxu0 0.0
        %1648 = vmatpush1.msra.mxu0 0.0
        %1649 = vmatprep.subr.mxu0 0.0
        %1650 = vmatpush1.msra.mxu0 0.0
        %1651 = vmatprep.subr.mxu0 0.0
        %1652 = vmatpush1.msra.mxu0 0.0
        %1653 = vmatprep.subr.mxu0 0.0
        %1654 = vmatpush1.msra.mxu0 0.0
        %1655 = vmatprep.subr.mxu0 0.0
        %1656 = vmatpush1.msra.mxu0 0.0
        %1657 = vmatprep.subr.mxu0 0.0
        %1658 = vmatpush1.msra.mxu0 0.0
        %1659 = vmatprep.mubr.f32.mxu0 0.0
        %v1660 = vand.u32 %v752, 4294901760
        %1661 = vmatmul.mubr.f32.gmra.mrb[0].mxu0 %v1660
        %v1662 = vpop.f32.mrb[0].mxu0
        %v1663 = vadd.f32 %v1523, %v1662
        %v1664 = vpop.f32.mrb[0].mxu0
        %1665 = vmatprep.mubr.f32.mxu0 0.0
        %v1666 = vand.u32 %v755, 4294901760
        %1667 = vmatmul.mubr.f32.gmra.mrb[0].mxu0 %v1666
        %v1668 = vpop.f32.mrb[0].mxu0
        %v1669 = vadd.f32 %v1529, %v1668
        %v1670 = vpop.f32.mrb[0].mxu0
        %1671 = vmatprep.mubr.f32.mxu0 0.0
        %v1672 = vand.u32 %v758, 4294901760
        %1673 = vmatmul.mubr.f32.gmra.mrb[0].mxu0 %v1672
        %v1674 = vpop.f32.mrb[0].mxu0
        %v1675 = vadd.f32 %v1535, %v1674
        %v1676 = vpop.f32.mrb[0].mxu0
        %1677 = vmatprep.mubr.f32.mxu0 0.0
        %v1678 = vand.u32 %v761, 4294901760
        %1679 = vmatmul.mubr.f32.gmra.mrb[0].mxu0 %v1678
        %v1680 = vpop.f32.mrb[0].mxu0
        %v1681 = vadd.f32 %v1541, %v1680
        %v1682 = vpop.f32.mrb[0].mxu0
        %1683 = vmatprep.mubr.f32.mxu0 0.0
        %v1684 = vand.u32 %v764, 4294901760
        %1685 = vmatmul.mubr.f32.gmra.mrb[0].mxu0 %v1684
        %v1686 = vpop.f32.mrb[0].mxu0
        %v1687 = vadd.f32 %v1547, %v1686
        %v1688 = vpop.f32.mrb[0].mxu0
        %1689 = vmatprep.mubr.f32.mxu0 0.0
        %v1690 = vand.u32 %v767, 4294901760
        %1691 = vmatmul.mubr.f32.gmra.mrb[0].mxu0 %v1690
        %v1692 = vpop.f32.mrb[0].mxu0
        %v1693 = vadd.f32 %v1553, %v1692
        %v1694 = vpop.f32.mrb[0].mxu0
        %1695 = vmatprep.mubr.f32.mxu0 0.0
        %v1696 = vand.u32 %v770, 4294901760
        %1697 = vmatmul.mubr.f32.gmra.mrb[0].mxu0 %v1696
        %v1698 = vpop.f32.mrb[0].mxu0
        %v1699 = vadd.f32 %v1559, %v1698
        %v1700 = vpop.f32.mrb[0].mxu0
        %1701 = vmatprep.mubr.f32.mxu0 0.0
        %v1702 = vand.u32 %v773, 4294901760
        %1703 = vmatmul.mubr.f32.gmra.mrb[0].mxu0 %v1702
        %v1704 = vpop.f32.mrb[0].mxu0
        %v1705 = vadd.f32 %v1565, %v1704
        %v1706 = vpop.f32.mrb[0].mxu0
        %1707 = vmatprep.mubr.f32.mxu0 0.0
        %v1708 = vand.u32 %v776, 4294901760
        %1709 = vmatmul.mubr.f32.gmra.mrb[0].mxu0 %v1708
        %v1710 = vpop.f32.mrb[0].mxu0
        %v1711 = vadd.f32 %v1571, %v1710
        %v1712 = vpop.f32.mrb[0].mxu0
        %1713 = vmatprep.mubr.f32.mxu0 0.0
        %v1714 = vand.u32 %v779, 4294901760
        %1715 = vmatmul.mubr.f32.gmra.mrb[0].mxu0 %v1714
        %v1716 = vpop.f32.mrb[0].mxu0
        %v1717 = vadd.f32 %v1577, %v1716
        %v1718 = vpop.f32.mrb[0].mxu0
        %1719 = vmatprep.mubr.f32.mxu0 0.0
        %v1720 = vand.u32 %v782, 4294901760
        %1721 = vmatmul.mubr.f32.gmra.mrb[0].mxu0 %v1720
        %v1722 = vpop.f32.mrb[0].mxu0
        %v1723 = vadd.f32 %v1583, %v1722
        %v1724 = vpop.f32.mrb[0].mxu0
        %1725 = vmatprep.mubr.f32.mxu0 0.0
        %v1726 = vand.u32 %v785, 4294901760
        %1727 = vmatmul.mubr.f32.gmra.mrb[0].mxu0 %v1726
        %v1728 = vpop.f32.mrb[0].mxu0
        %v1729 = vadd.f32 %v1589, %v1728
        %v1730 = vpop.f32.mrb[0].mxu0
        %1731 = vdwg.mxu0
        %v1732 = vld [vmem:[%s3] sm:$0xff]
        %v1733 = vld [vmem:[%s3 + $0x8] sm:$0xff]
        %v1735 = vsel %vm734, %v1663, 0
        %v1738 = vsel %vm734, %v1669, 0
        %v1741 = vsel %vm734, %v1675, 0
        %v1744 = vsel %vm734, %v1681, 0
        %v1747 = vsel %vm734, %v1687, 0
        %v1750 = vsel %vm734, %v1693, 0
        %v1753 = vsel %vm734, %v1699, 0
        %v1756 = vsel %vm734, %v1705, 0
        %v1759 = vsel %vm734, %v1711, 0
        %v1762 = vsel %vm734, %v1717, 0
        %v1765 = vsel %vm734, %v1723, 0
        %v1768 = vsel %vm734, %v1729, 0
        %1770 = vmatprep.subr.mxu0 0.0
        %v1771 = vand.u32 %v1732, 4294901760
        %1772 = vmatpush1.msra.mxu0 %v1771
        %1773 = vmatprep.subr.mxu0 0.0
        %v1774 = vand.u32 %v1733, 4294901760
        %1775 = vmatpush1.msra.mxu0 %v1774
        %1776 = vmatprep.subr.mxu0 0.0
        %1777 = vmatpush1.msra.mxu0 0.0
        %1778 = vmatprep.subr.mxu0 0.0
        %1779 = vmatpush1.msra.mxu0 0.0
        %1780 = vmatprep.subr.mxu0 0.0
        %1781 = vmatpush1.msra.mxu0 0.0
        %1782 = vmatprep.subr.mxu0 0.0
        %1783 = vmatpush1.msra.mxu0 0.0
        %1784 = vmatprep.subr.mxu0 0.0
        %1785 = vmatpush1.msra.mxu0 0.0
        %1786 = vmatprep.subr.mxu0 0.0
        %1787 = vmatpush1.msra.mxu0 0.0
        %1788 = vmatprep.subr.mxu0 0.0
        %1789 = vmatpush1.msra.mxu0 0.0
        %1790 = vmatprep.subr.mxu0 0.0
        %1791 = vmatpush1.msra.mxu0 0.0
        %1792 = vmatprep.subr.mxu0 0.0
        %1793 = vmatpush1.msra.mxu0 0.0
        %1794 = vmatprep.subr.mxu0 0.0
        %1795 = vmatpush1.msra.mxu0 0.0
        %1796 = vmatprep.subr.mxu0 0.0
        %1797 = vmatpush1.msra.mxu0 0.0
        %1798 = vmatprep.subr.mxu0 0.0
        %1799 = vmatpush1.msra.mxu0 0.0
        %1800 = vmatprep.subr.mxu0 0.0
        %1801 = vmatpush1.msra.mxu0 0.0
        %1802 = vmatprep.subr.mxu0 0.0
        %1803 = vmatpush1.msra.mxu0 0.0
        %1804 = vmatprep.subr.mxu0 0.0
        %1805 = vmatpush1.msra.mxu0 0.0
        %1806 = vmatprep.subr.mxu0 0.0
        %1807 = vmatpush1.msra.mxu0 0.0
        %1808 = vmatprep.subr.mxu0 0.0
        %1809 = vmatpush1.msra.mxu0 0.0
        %1810 = vmatprep.subr.mxu0 0.0
        %1811 = vmatpush1.msra.mxu0 0.0
        %1812 = vmatprep.subr.mxu0 0.0
        %1813 = vmatpush1.msra.mxu0 0.0
        %1814 = vmatprep.subr.mxu0 0.0
        %1815 = vmatpush1.msra.mxu0 0.0
        %1816 = vmatprep.subr.mxu0 0.0
        %1817 = vmatpush1.msra.mxu0 0.0
        %1818 = vmatprep.subr.mxu0 0.0
        %1819 = vmatpush1.msra.mxu0 0.0
        %1820 = vmatprep.subr.mxu0 0.0
        %1821 = vmatpush1.msra.mxu0 0.0
        %1822 = vmatprep.subr.mxu0 0.0
        %1823 = vmatpush1.msra.mxu0 0.0
        %1824 = vmatprep.subr.mxu0 0.0
        %1825 = vmatpush1.msra.mxu0 0.0
        %1826 = vmatprep.subr.mxu0 0.0
        %1827 = vmatpush1.msra.mxu0 0.0
        %1828 = vmatprep.subr.mxu0 0.0
        %1829 = vmatpush1.msra.mxu0 0.0
        %1830 = vmatprep.subr.mxu0 0.0
        %1831 = vmatpush1.msra.mxu0 0.0
        %1832 = vmatprep.subr.mxu0 0.0
        %1833 = vmatpush1.msra.mxu0 0.0
        %1834 = vmatprep.subr.mxu0 0.0
        %1835 = vmatpush1.msra.mxu0 0.0
        %1836 = vmatprep.mubr.f32.mxu0 0.0
        %v1837 = vand.u32 %v1735, 4294901760
        %v1838 = vsub.f32 %v1735, %v1837
        %v1839 = vand.u32 %v1838, 4294901760
        %v1840 = vsub.f32 %v1838, %v1839
        %v1841 = vand.u32 %v1840, 4294901760
        %1842 = vmatmul.mubr.f32.gmra.mrb[0].mxu0 %v1841
        %v1843 = vpop.f32.mrb[0].mxu0
        %v1844 = vadd.f32 0.0, %v1843
        %v1845 = vpop.f32.mrb[0].mxu0
        %1846 = vmatprep.mubr.f32.mxu0 0.0
        %v1847 = vand.u32 %v1738, 4294901760
        %v1848 = vsub.f32 %v1738, %v1847
        %v1849 = vand.u32 %v1848, 4294901760
        %v1850 = vsub.f32 %v1848, %v1849
        %v1851 = vand.u32 %v1850, 4294901760
        %1852 = vmatmul.mubr.f32.gmra.mrb[0].mxu0 %v1851
        %v1853 = vpop.f32.mrb[0].mxu0
        %v1854 = vadd.f32 0.0, %v1853
        %v1855 = vpop.f32.mrb[0].mxu0
        %1856 = vmatprep.mubr.f32.mxu0 0.0
        %v1857 = vand.u32 %v1741, 4294901760
        %v1858 = vsub.f32 %v1741, %v1857
        %v1859 = vand.u32 %v1858, 4294901760
        %v1860 = vsub.f32 %v1858, %v1859
        %v1861 = vand.u32 %v1860, 4294901760
        %1862 = vmatmul.mubr.f32.gmra.mrb[0].mxu0 %v1861
        %v1863 = vpop.f32.mrb[0].mxu0
        %v1864 = vadd.f32 0.0, %v1863
        %v1865 = vpop.f32.mrb[0].mxu0
        %1866 = vmatprep.mubr.f32.mxu0 0.0
        %v1867 = vand.u32 %v1744, 4294901760
        %v1868 = vsub.f32 %v1744, %v1867
        %v1869 = vand.u32 %v1868, 4294901760
        %v1870 = vsub.f32 %v1868, %v1869
        %v1871 = vand.u32 %v1870, 4294901760
        %1872 = vmatmul.mubr.f32.gmra.mrb[0].mxu0 %v1871
        %v1873 = vpop.f32.mrb[0].mxu0
        %v1874 = vadd.f32 0.0, %v1873
        %v1875 = vpop.f32.mrb[0].mxu0
        %1876 = vmatprep.mubr.f32.mxu0 0.0
        %v1877 = vand.u32 %v1747, 4294901760
        %v1878 = vsub.f32 %v1747, %v1877
        %v1879 = vand.u32 %v1878, 4294901760
        %v1880 = vsub.f32 %v1878, %v1879
        %v1881 = vand.u32 %v1880, 4294901760
        %1882 = vmatmul.mubr.f32.gmra.mrb[0].mxu0 %v1881
        %v1883 = vpop.f32.mrb[0].mxu0
        %v1884 = vadd.f32 0.0, %v1883
        %v1885 = vpop.f32.mrb[0].mxu0
        %1886 = vmatprep.mubr.f32.mxu0 0.0
        %v1887 = vand.u32 %v1750, 4294901760
        %v1888 = vsub.f32 %v1750, %v1887
        %v1889 = vand.u32 %v1888, 4294901760
        %v1890 = vsub.f32 %v1888, %v1889
        %v1891 = vand.u32 %v1890, 4294901760
        %1892 = vmatmul.mubr.f32.gmra.mrb[0].mxu0 %v1891
        %v1893 = vpop.f32.mrb[0].mxu0
        %v1894 = vadd.f32 0.0, %v1893
        %v1895 = vpop.f32.mrb[0].mxu0
        %1896 = vmatprep.mubr.f32.mxu0 0.0
        %v1897 = vand.u32 %v1753, 4294901760
        %v1898 = vsub.f32 %v1753, %v1897
        %v1899 = vand.u32 %v1898, 4294901760
        %v1900 = vsub.f32 %v1898, %v1899
        %v1901 = vand.u32 %v1900, 4294901760
        %1902 = vmatmul.mubr.f32.gmra.mrb[0].mxu0 %v1901
        %v1903 = vpop.f32.mrb[0].mxu0
        %v1904 = vadd.f32 0.0, %v1903
        %v1905 = vpop.f32.mrb[0].mxu0
        %1906 = vmatprep.mubr.f32.mxu0 0.0
        %v1907 = vand.u32 %v1756, 4294901760
        %v1908 = vsub.f32 %v1756, %v1907
        %v1909 = vand.u32 %v1908, 4294901760
        %v1910 = vsub.f32 %v1908, %v1909
        %v1911 = vand.u32 %v1910, 4294901760
        %1912 = vmatmul.mubr.f32.gmra.mrb[0].mxu0 %v1911
        %v1913 = vpop.f32.mrb[0].mxu0
        %v1914 = vadd.f32 0.0, %v1913
        %v1915 = vpop.f32.mrb[0].mxu0
        %1916 = vmatprep.mubr.f32.mxu0 0.0
        %v1917 = vand.u32 %v1759, 4294901760
        %v1918 = vsub.f32 %v1759, %v1917
        %v1919 = vand.u32 %v1918, 4294901760
        %v1920 = vsub.f32 %v1918, %v1919
        %v1921 = vand.u32 %v1920, 4294901760
        %1922 = vmatmul.mubr.f32.gmra.mrb[0].mxu0 %v1921
        %v1923 = vpop.f32.mrb[0].mxu0
        %v1924 = vadd.f32 0.0, %v1923
        %v1925 = vpop.f32.mrb[0].mxu0
        %1926 = vmatprep.mubr.f32.mxu0 0.0
        %v1927 = vand.u32 %v1762, 4294901760
        %v1928 = vsub.f32 %v1762, %v1927
        %v1929 = vand.u32 %v1928, 4294901760
        %v1930 = vsub.f32 %v1928, %v1929
        %v1931 = vand.u32 %v1930, 4294901760
        %1932 = vmatmul.mubr.f32.gmra.mrb[0].mxu0 %v1931
        %v1933 = vpop.f32.mrb[0].mxu0
        %v1934 = vadd.f32 0.0, %v1933
        %v1935 = vpop.f32.mrb[0].mxu0
        %1936 = vmatprep.mubr.f32.mxu0 0.0
        %v1937 = vand.u32 %v1765, 4294901760
        %v1938 = vsub.f32 %v1765, %v1937
        %v1939 = vand.u32 %v1938, 4294901760
        %v1940 = vsub.f32 %v1938, %v1939
        %v1941 = vand.u32 %v1940, 4294901760
        %1942 = vmatmul.mubr.f32.gmra.mrb[0].mxu0 %v1941
        %v1943 = vpop.f32.mrb[0].mxu0
        %v1944 = vadd.f32 0.0, %v1943
        %v1945 = vpop.f32.mrb[0].mxu0
        %1946 = vmatprep.mubr.f32.mxu0 0.0
        %v1947 = vand.u32 %v1768, 4294901760
        %v1948 = vsub.f32 %v1768, %v1947
        %v1949 = vand.u32 %v1948, 4294901760
        %v1950 = vsub.f32 %v1948, %v1949
        %v1951 = vand.u32 %v1950, 4294901760
        %1952 = vmatmul.mubr.f32.gmra.mrb[0].mxu0 %v1951
        %v1953 = vpop.f32.mrb[0].mxu0
        %v1954 = vadd.f32 0.0, %v1953
        %v1955 = vpop.f32.mrb[0].mxu0
        %1956 = vdwg.mxu0
        %1957 = vmatprep.subr.mxu0 0.0
        %v1958 = vand.u32 %v1732, 4294901760
        %v1959 = vsub.f32 %v1732, %v1958
        %v1960 = vand.u32 %v1959, 4294901760
        %v1961 = vsub.f32 %v1959, %v1960
        %v1962 = vand.u32 %v1961, 4294901760
        %1963 = vmatpush1.msra.mxu0 %v1962
        %1964 = vmatprep.subr.mxu0 0.0
        %v1965 = vand.u32 %v1733, 4294901760
        %v1966 = vsub.f32 %v1733, %v1965
        %v1967 = vand.u32 %v1966, 4294901760
        %v1968 = vsub.f32 %v1966, %v1967
        %v1969 = vand.u32 %v1968, 4294901760
        %1970 = vmatpush1.msra.mxu0 %v1969
        %1971 = vmatprep.subr.mxu0 0.0
        %1972 = vmatpush1.msra.mxu0 0.0
        %1973 = vmatprep.subr.mxu0 0.0
        %1974 = vmatpush1.msra.mxu0 0.0
        %1975 = vmatprep.subr.mxu0 0.0
        %1976 = vmatpush1.msra.mxu0 0.0
        %1977 = vmatprep.subr.mxu0 0.0
        %1978 = vmatpush1.msra.mxu0 0.0
        %1979 = vmatprep.subr.mxu0 0.0
        %1980 = vmatpush1.msra.mxu0 0.0
        %1981 = vmatprep.subr.mxu0 0.0
        %1982 = vmatpush1.msra.mxu0 0.0
        %1983 = vmatprep.subr.mxu0 0.0
        %1984 = vmatpush1.msra.mxu0 0.0
        %1985 = vmatprep.subr.mxu0 0.0
        %1986 = vmatpush1.msra.mxu0 0.0
        %1987 = vmatprep.subr.mxu0 0.0
        %1988 = vmatpush1.msra.mxu0 0.0
        %1989 = vmatprep.subr.mxu0 0.0
        %1990 = vmatpush1.msra.mxu0 0.0
        %1991 = vmatprep.subr.mxu0 0.0
        %1992 = vmatpush1.msra.mxu0 0.0
        %1993 = vmatprep.subr.mxu0 0.0
        %1994 = vmatpush1.msra.mxu0 0.0
        %1995 = vmatprep.subr.mxu0 0.0
        %1996 = vmatpush1.msra.mxu0 0.0
        %1997 = vmatprep.subr.mxu0 0.0
        %1998 = vmatpush1.msra.mxu0 0.0
        %1999 = vmatprep.subr.mxu0 0.0
        %2000 = vmatpush1.msra.mxu0 0.0
        %2001 = vmatprep.subr.mxu0 0.0
        %2002 = vmatpush1.msra.mxu0 0.0
        %2003 = vmatprep.subr.mxu0 0.0
        %2004 = vmatpush1.msra.mxu0 0.0
        %2005 = vmatprep.subr.mxu0 0.0
        %2006 = vmatpush1.msra.mxu0 0.0
        %2007 = vmatprep.subr.mxu0 0.0
        %2008 = vmatpush1.msra.mxu0 0.0
        %2009 = vmatprep.subr.mxu0 0.0
        %2010 = vmatpush1.msra.mxu0 0.0
        %2011 = vmatprep.subr.mxu0 0.0
        %2012 = vmatpush1.msra.mxu0 0.0
        %2013 = vmatprep.subr.mxu0 0.0
        %2014 = vmatpush1.msra.mxu0 0.0
        %2015 = vmatprep.subr.mxu0 0.0
        %2016 = vmatpush1.msra.mxu0 0.0
        %2017 = vmatprep.subr.mxu0 0.0
        %2018 = vmatpush1.msra.mxu0 0.0
        %2019 = vmatprep.subr.mxu0 0.0
        %2020 = vmatpush1.msra.mxu0 0.0
        %2021 = vmatprep.subr.mxu0 0.0
        %2022 = vmatpush1.msra.mxu0 0.0
        %2023 = vmatprep.subr.mxu0 0.0
        %2024 = vmatpush1.msra.mxu0 0.0
        %2025 = vmatprep.subr.mxu0 0.0
        %2026 = vmatpush1.msra.mxu0 0.0
        %2027 = vmatprep.subr.mxu0 0.0
        %2028 = vmatpush1.msra.mxu0 0.0
        %2029 = vmatprep.subr.mxu0 0.0
        %2030 = vmatpush1.msra.mxu0 0.0
        %2031 = vmatprep.mubr.f32.mxu0 0.0
        %v2032 = vand.u32 %v1735, 4294901760
        %2033 = vmatmul.mubr.f32.gmra.mrb[0].mxu0 %v2032
        %v2034 = vpop.f32.mrb[0].mxu0
        %v2035 = vadd.f32 %v1844, %v2034
        %v2036 = vpop.f32.mrb[0].mxu0
        %2037 = vmatprep.mubr.f32.mxu0 0.0
        %v2038 = vand.u32 %v1738, 4294901760
        %2039 = vmatmul.mubr.f32.gmra.mrb[0].mxu0 %v2038
        %v2040 = vpop.f32.mrb[0].mxu0
        %v2041 = vadd.f32 %v1854, %v2040
        %v2042 = vpop.f32.mrb[0].mxu0
        %2043 = vmatprep.mubr.f32.mxu0 0.0
        %v2044 = vand.u32 %v1741, 4294901760
        %2045 = vmatmul.mubr.f32.gmra.mrb[0].mxu0 %v2044
        %v2046 = vpop.f32.mrb[0].mxu0
        %v2047 = vadd.f32 %v1864, %v2046
        %v2048 = vpop.f32.mrb[0].mxu0
        %2049 = vmatprep.mubr.f32.mxu0 0.0
        %v2050 = vand.u32 %v1744, 4294901760
        %2051 = vmatmul.mubr.f32.gmra.mrb[0].mxu0 %v2050
        %v2052 = vpop.f32.mrb[0].mxu0
        %v2053 = vadd.f32 %v1874, %v2052
        %v2054 = vpop.f32.mrb[0].mxu0
        %2055 = vmatprep.mubr.f32.mxu0 0.0
        %v2056 = vand.u32 %v1747, 4294901760
        %2057 = vmatmul.mubr.f32.gmra.mrb[0].mxu0 %v2056
        %v2058 = vpop.f32.mrb[0].mxu0
        %v2059 = vadd.f32 %v1884, %v2058
        %v2060 = vpop.f32.mrb[0].mxu0
        %2061 = vmatprep.mubr.f32.mxu0 0.0
        %v2062 = vand.u32 %v1750, 4294901760
        %2063 = vmatmul.mubr.f32.gmra.mrb[0].mxu0 %v2062
        %v2064 = vpop.f32.mrb[0].mxu0
        %v2065 = vadd.f32 %v1894, %v2064
        %v2066 = vpop.f32.mrb[0].mxu0
        %2067 = vmatprep.mubr.f32.mxu0 0.0
        %v2068 = vand.u32 %v1753, 4294901760
        %2069 = vmatmul.mubr.f32.gmra.mrb[0].mxu0 %v2068
        %v2070 = vpop.f32.mrb[0].mxu0
        %v2071 = vadd.f32 %v1904, %v2070
        %v2072 = vpop.f32.mrb[0].mxu0
        %2073 = vmatprep.mubr.f32.mxu0 0.0
        %v2074 = vand.u32 %v1756, 4294901760
        %2075 = vmatmul.mubr.f32.gmra.mrb[0].mxu0 %v2074
        %v2076 = vpop.f32.mrb[0].mxu0
        %v2077 = vadd.f32 %v1914, %v2076
        %v2078 = vpop.f32.mrb[0].mxu0
        %2079 = vmatprep.mubr.f32.mxu0 0.0
        %v2080 = vand.u32 %v1759, 4294901760
        %2081 = vmatmul.mubr.f32.gmra.mrb[0].mxu0 %v2080
        %v2082 = vpop.f32.mrb[0].mxu0
        %v2083 = vadd.f32 %v1924, %v2082
        %v2084 = vpop.f32.mrb[0].mxu0
        %2085 = vmatprep.mubr.f32.mxu0 0.0
        %v2086 = vand.u32 %v1762, 4294901760
        %2087 = vmatmul.mubr.f32.gmra.mrb[0].mxu0 %v2086
        %v2088 = vpop.f32.mrb[0].mxu0
        %v2089 = vadd.f32 %v1934, %v2088
        %v2090 = vpop.f32.mrb[0].mxu0
        %2091 = vmatprep.mubr.f32.mxu0 0.0
        %v2092 = vand.u32 %v1765, 4294901760
        %2093 = vmatmul.mubr.f32.gmra.mrb[0].mxu0 %v2092
        %v2094 = vpop.f32.mrb[0].mxu0
        %v2095 = vadd.f32 %v1944, %v2094
        %v2096 = vpop.f32.mrb[0].mxu0
        %2097 = vmatprep.mubr.f32.mxu0 0.0
        %v2098 = vand.u32 %v1768, 4294901760
        %2099 = vmatmul.mubr.f32.gmra.mrb[0].mxu0 %v2098
        %v2100 = vpop.f32.mrb[0].mxu0
        %v2101 = vadd.f32 %v1954, %v2100
        %v2102 = vpop.f32.mrb[0].mxu0
        %2103 = vdwg.mxu0
        %2104 = vmatprep.subr.mxu0 0.0
        %v2105 = vand.u32 %v1732, 4294901760
        %v2106 = vsub.f32 %v1732, %v2105
        %2107 = vmatpush1.msra.mxu0 %v2106
        %2108 = vmatprep.subr.mxu0 0.0
        %v2109 = vand.u32 %v1733, 4294901760
        %v2110 = vsub.f32 %v1733, %v2109
        %2111 = vmatpush1.msra.mxu0 %v2110
        %2112 = vmatprep.subr.mxu0 0.0
        %2113 = vmatpush1.msra.mxu0 0.0
        %2114 = vmatprep.subr.mxu0 0.0
        %2115 = vmatpush1.msra.mxu0 0.0
        %2116 = vmatprep.subr.mxu0 0.0
        %2117 = vmatpush1.msra.mxu0 0.0
        %2118 = vmatprep.subr.mxu0 0.0
        %2119 = vmatpush1.msra.mxu0 0.0
        %2120 = vmatprep.subr.mxu0 0.0
        %2121 = vmatpush1.msra.mxu0 0.0
        %2122 = vmatprep.subr.mxu0 0.0
        %2123 = vmatpush1.msra.mxu0 0.0
        %2124 = vmatprep.subr.mxu0 0.0
        %2125 = vmatpush1.msra.mxu0 0.0
        %2126 = vmatprep.subr.mxu0 0.0
        %2127 = vmatpush1.msra.mxu0 0.0
        %2128 = vmatprep.subr.mxu0 0.0
        %2129 = vmatpush1.msra.mxu0 0.0
        %2130 = vmatprep.subr.mxu0 0.0
        %2131 = vmatpush1.msra.mxu0 0.0
        %2132 = vmatprep.subr.mxu0 0.0
        %2133 = vmatpush1.msra.mxu0 0.0
        %2134 = vmatprep.subr.mxu0 0.0
        %2135 = vmatpush1.msra.mxu0 0.0
        %2136 = vmatprep.subr.mxu0 0.0
        %2137 = vmatpush1.msra.mxu0 0.0
        %2138 = vmatprep.subr.mxu0 0.0
        %2139 = vmatpush1.msra.mxu0 0.0
        %2140 = vmatprep.subr.mxu0 0.0
        %2141 = vmatpush1.msra.mxu0 0.0
        %2142 = vmatprep.subr.mxu0 0.0
        %2143 = vmatpush1.msra.mxu0 0.0
        %2144 = vmatprep.subr.mxu0 0.0
        %2145 = vmatpush1.msra.mxu0 0.0
        %2146 = vmatprep.subr.mxu0 0.0
        %2147 = vmatpush1.msra.mxu0 0.0
        %2148 = vmatprep.subr.mxu0 0.0
        %2149 = vmatpush1.msra.mxu0 0.0
        %2150 = vmatprep.subr.mxu0 0.0
        %2151 = vmatpush1.msra.mxu0 0.0
        %2152 = vmatprep.subr.mxu0 0.0
        %2153 = vmatpush1.msra.mxu0 0.0
        %2154 = vmatprep.subr.mxu0 0.0
        %2155 = vmatpush1.msra.mxu0 0.0
        %2156 = vmatprep.subr.mxu0 0.0
        %2157 = vmatpush1.msra.mxu0 0.0
        %2158 = vmatprep.subr.mxu0 0.0
        %2159 = vmatpush1.msra.mxu0 0.0
        %2160 = vmatprep.subr.mxu0 0.0
        %2161 = vmatpush1.msra.mxu0 0.0
        %2162 = vmatprep.subr.mxu0 0.0
        %2163 = vmatpush1.msra.mxu0 0.0
        %2164 = vmatprep.subr.mxu0 0.0
        %2165 = vmatpush1.msra.mxu0 0.0
        %2166 = vmatprep.subr.mxu0 0.0
        %2167 = vmatpush1.msra.mxu0 0.0
        %2168 = vmatprep.subr.mxu0 0.0
        %2169 = vmatpush1.msra.mxu0 0.0
        %2170 = vmatprep.subr.mxu0 0.0
        %2171 = vmatpush1.msra.mxu0 0.0
        %2172 = vmatprep.mubr.f32.mxu0 0.0
        %v2173 = vand.u32 %v1735, 4294901760
        %v2174 = vsub.f32 %v1735, %v2173
        %2175 = vmatmul.mubr.f32.gmra.mrb[0].mxu0 %v2174
        %v2176 = vpop.f32.mrb[0].mxu0
        %v2177 = vadd.f32 %v2035, %v2176
        %v2178 = vpop.f32.mrb[0].mxu0
        %2179 = vmatprep.mubr.f32.mxu0 0.0
        %v2180 = vand.u32 %v1738, 4294901760
        %v2181 = vsub.f32 %v1738, %v2180
        %2182 = vmatmul.mubr.f32.gmra.mrb[0].mxu0 %v2181
        %v2183 = vpop.f32.mrb[0].mxu0
        %v2184 = vadd.f32 %v2041, %v2183
        %v2185 = vpop.f32.mrb[0].mxu0
        %2186 = vmatprep.mubr.f32.mxu0 0.0
        %v2187 = vand.u32 %v1741, 4294901760
        %v2188 = vsub.f32 %v1741, %v2187
        %2189 = vmatmul.mubr.f32.gmra.mrb[0].mxu0 %v2188
        %v2190 = vpop.f32.mrb[0].mxu0
        %v2191 = vadd.f32 %v2047, %v2190
        %v2192 = vpop.f32.mrb[0].mxu0
        %2193 = vmatprep.mubr.f32.mxu0 0.0
        %v2194 = vand.u32 %v1744, 4294901760
        %v2195 = vsub.f32 %v1744, %v2194
        %2196 = vmatmul.mubr.f32.gmra.mrb[0].mxu0 %v2195
        %v2197 = vpop.f32.mrb[0].mxu0
        %v2198 = vadd.f32 %v2053, %v2197
        %v2199 = vpop.f32.mrb[0].mxu0
        %2200 = vmatprep.mubr.f32.mxu0 0.0
        %v2201 = vand.u32 %v1747, 4294901760
        %v2202 = vsub.f32 %v1747, %v2201
        %2203 = vmatmul.mubr.f32.gmra.mrb[0].mxu0 %v2202
        %v2204 = vpop.f32.mrb[0].mxu0
        %v2205 = vadd.f32 %v2059, %v2204
        %v2206 = vpop.f32.mrb[0].mxu0
        %2207 = vmatprep.mubr.f32.mxu0 0.0
        %v2208 = vand.u32 %v1750, 4294901760
        %v2209 = vsub.f32 %v1750, %v2208
        %2210 = vmatmul.mubr.f32.gmra.mrb[0].mxu0 %v2209
        %v2211 = vpop.f32.mrb[0].mxu0
        %v2212 = vadd.f32 %v2065, %v2211
        %v2213 = vpop.f32.mrb[0].mxu0
        %2214 = vmatprep.mubr.f32.mxu0 0.0
        %v2215 = vand.u32 %v1753, 4294901760
        %v2216 = vsub.f32 %v1753, %v2215
        %2217 = vmatmul.mubr.f32.gmra.mrb[0].mxu0 %v2216
        %v2218 = vpop.f32.mrb[0].mxu0
        %v2219 = vadd.f32 %v2071, %v2218
        %v2220 = vpop.f32.mrb[0].mxu0
        %2221 = vmatprep.mubr.f32.mxu0 0.0
        %v2222 = vand.u32 %v1756, 4294901760
        %v2223 = vsub.f32 %v1756, %v2222
        %2224 = vmatmul.mubr.f32.gmra.mrb[0].mxu0 %v2223
        %v2225 = vpop.f32.mrb[0].mxu0
        %v2226 = vadd.f32 %v2077, %v2225
        %v2227 = vpop.f32.mrb[0].mxu0
        %2228 = vmatprep.mubr.f32.mxu0 0.0
        %v2229 = vand.u32 %v1759, 4294901760
        %v2230 = vsub.f32 %v1759, %v2229
        %2231 = vmatmul.mubr.f32.gmra.mrb[0].mxu0 %v2230
        %v2232 = vpop.f32.mrb[0].mxu0
        %v2233 = vadd.f32 %v2083, %v2232
        %v2234 = vpop.f32.mrb[0].mxu0
        %2235 = vmatprep.mubr.f32.mxu0 0.0
        %v2236 = vand.u32 %v1762, 4294901760
        %v2237 = vsub.f32 %v1762, %v2236
        %2238 = vmatmul.mubr.f32.gmra.mrb[0].mxu0 %v2237
        %v2239 = vpop.f32.mrb[0].mxu0
        %v2240 = vadd.f32 %v2089, %v2239
        %v2241 = vpop.f32.mrb[0].mxu0
        %2242 = vmatprep.mubr.f32.mxu0 0.0
        %v2243 = vand.u32 %v1765, 4294901760
        %v2244 = vsub.f32 %v1765, %v2243
        %2245 = vmatmul.mubr.f32.gmra.mrb[0].mxu0 %v2244
        %v2246 = vpop.f32.mrb[0].mxu0
        %v2247 = vadd.f32 %v2095, %v2246
        %v2248 = vpop.f32.mrb[0].mxu0
        %2249 = vmatprep.mubr.f32.mxu0 0.0
        %v2250 = vand.u32 %v1768, 4294901760
        %v2251 = vsub.f32 %v1768, %v2250
        %2252 = vmatmul.mubr.f32.gmra.mrb[0].mxu0 %v2251
        %v2253 = vpop.f32.mrb[0].mxu0
        %v2254 = vadd.f32 %v2101, %v2253
        %v2255 = vpop.f32.mrb[0].mxu0
        %2256 = vdwg.mxu0
        %2257 = vmatprep.subr.mxu0 0.0
        %v2258 = vand.u32 %v1732, 4294901760
        %2259 = vmatpush1.msra.mxu0 %v2258
        %2260 = vmatprep.subr.mxu0 0.0
        %v2261 = vand.u32 %v1733, 4294901760
        %2262 = vmatpush1.msra.mxu0 %v2261
        %2263 = vmatprep.subr.mxu0 0.0
        %2264 = vmatpush1.msra.mxu0 0.0
        %2265 = vmatprep.subr.mxu0 0.0
        %2266 = vmatpush1.msra.mxu0 0.0
        %2267 = vmatprep.subr.mxu0 0.0
        %2268 = vmatpush1.msra.mxu0 0.0
        %2269 = vmatprep.subr.mxu0 0.0
        %2270 = vmatpush1.msra.mxu0 0.0
        %2271 = vmatprep.subr.mxu0 0.0
        %2272 = vmatpush1.msra.mxu0 0.0
        %2273 = vmatprep.subr.mxu0 0.0
        %2274 = vmatpush1.msra.mxu0 0.0
        %2275 = vmatprep.subr.mxu0 0.0
        %2276 = vmatpush1.msra.mxu0 0.0
        %2277 = vmatprep.subr.mxu0 0.0
        %2278 = vmatpush1.msra.mxu0 0.0
        %2279 = vmatprep.subr.mxu0 0.0
        %2280 = vmatpush1.msra.mxu0 0.0
        %2281 = vmatprep.subr.mxu0 0.0
        %2282 = vmatpush1.msra.mxu0 0.0
        %2283 = vmatprep.subr.mxu0 0.0
        %2284 = vmatpush1.msra.mxu0 0.0
        %2285 = vmatprep.subr.mxu0 0.0
        %2286 = vmatpush1.msra.mxu0 0.0
        %2287 = vmatprep.subr.mxu0 0.0
        %2288 = vmatpush1.msra.mxu0 0.0
        %2289 = vmatprep.subr.mxu0 0.0
        %2290 = vmatpush1.msra.mxu0 0.0
        %2291 = vmatprep.subr.mxu0 0.0
        %2292 = vmatpush1.msra.mxu0 0.0
        %2293 = vmatprep.subr.mxu0 0.0
        %2294 = vmatpush1.msra.mxu0 0.0
        %2295 = vmatprep.subr.mxu0 0.0
        %2296 = vmatpush1.msra.mxu0 0.0
        %2297 = vmatprep.subr.mxu0 0.0
        %2298 = vmatpush1.msra.mxu0 0.0
        %2299 = vmatprep.subr.mxu0 0.0
        %2300 = vmatpush1.msra.mxu0 0.0
        %2301 = vmatprep.subr.mxu0 0.0
        %2302 = vmatpush1.msra.mxu0 0.0
        %2303 = vmatprep.subr.mxu0 0.0
        %2304 = vmatpush1.msra.mxu0 0.0
        %2305 = vmatprep.subr.mxu0 0.0
        %2306 = vmatpush1.msra.mxu0 0.0
        %2307 = vmatprep.subr.mxu0 0.0
        %2308 = vmatpush1.msra.mxu0 0.0
        %2309 = vmatprep.subr.mxu0 0.0
        %2310 = vmatpush1.msra.mxu0 0.0
        %2311 = vmatprep.subr.mxu0 0.0
        %2312 = vmatpush1.msra.mxu0 0.0
        %2313 = vmatprep.subr.mxu0 0.0
        %2314 = vmatpush1.msra.mxu0 0.0
        %2315 = vmatprep.subr.mxu0 0.0
        %2316 = vmatpush1.msra.mxu0 0.0
        %2317 = vmatprep.subr.mxu0 0.0
        %2318 = vmatpush1.msra.mxu0 0.0
        %2319 = vmatprep.subr.mxu0 0.0
        %2320 = vmatpush1.msra.mxu0 0.0
        %2321 = vmatprep.subr.mxu0 0.0
        %2322 = vmatpush1.msra.mxu0 0.0
        %2323 = vmatprep.mubr.f32.mxu0 0.0
        %v2324 = vand.u32 %v1735, 4294901760
        %v2325 = vsub.f32 %v1735, %v2324
        %v2326 = vand.u32 %v2325, 4294901760
        %2327 = vmatmul.mubr.f32.gmra.mrb[0].mxu0 %v2326
        %v2328 = vpop.f32.mrb[0].mxu0
        %v2329 = vadd.f32 %v2177, %v2328
        %v2330 = vpop.f32.mrb[0].mxu0
        %2331 = vmatprep.mubr.f32.mxu0 0.0
        %v2332 = vand.u32 %v1738, 4294901760
        %v2333 = vsub.f32 %v1738, %v2332
        %v2334 = vand.u32 %v2333, 4294901760
        %2335 = vmatmul.mubr.f32.gmra.mrb[0].mxu0 %v2334
        %v2336 = vpop.f32.mrb[0].mxu0
        %v2337 = vadd.f32 %v2184, %v2336
        %v2338 = vpop.f32.mrb[0].mxu0
        %2339 = vmatprep.mubr.f32.mxu0 0.0
        %v2340 = vand.u32 %v1741, 4294901760
        %v2341 = vsub.f32 %v1741, %v2340
        %v2342 = vand.u32 %v2341, 4294901760
        %2343 = vmatmul.mubr.f32.gmra.mrb[0].mxu0 %v2342
        %v2344 = vpop.f32.mrb[0].mxu0
        %v2345 = vadd.f32 %v2191, %v2344
        %v2346 = vpop.f32.mrb[0].mxu0
        %2347 = vmatprep.mubr.f32.mxu0 0.0
        %v2348 = vand.u32 %v1744, 4294901760
        %v2349 = vsub.f32 %v1744, %v2348
        %v2350 = vand.u32 %v2349, 4294901760
        %2351 = vmatmul.mubr.f32.gmra.mrb[0].mxu0 %v2350
        %v2352 = vpop.f32.mrb[0].mxu0
        %v2353 = vadd.f32 %v2198, %v2352
        %v2354 = vpop.f32.mrb[0].mxu0
        %2355 = vmatprep.mubr.f32.mxu0 0.0
        %v2356 = vand.u32 %v1747, 4294901760
        %v2357 = vsub.f32 %v1747, %v2356
        %v2358 = vand.u32 %v2357, 4294901760
        %2359 = vmatmul.mubr.f32.gmra.mrb[0].mxu0 %v2358
        %v2360 = vpop.f32.mrb[0].mxu0
        %v2361 = vadd.f32 %v2205, %v2360
        %v2362 = vpop.f32.mrb[0].mxu0
        %2363 = vmatprep.mubr.f32.mxu0 0.0
        %v2364 = vand.u32 %v1750, 4294901760
        %v2365 = vsub.f32 %v1750, %v2364
        %v2366 = vand.u32 %v2365, 4294901760
        %2367 = vmatmul.mubr.f32.gmra.mrb[0].mxu0 %v2366
        %v2368 = vpop.f32.mrb[0].mxu0
        %v2369 = vadd.f32 %v2212, %v2368
        %v2370 = vpop.f32.mrb[0].mxu0
        %2371 = vmatprep.mubr.f32.mxu0 0.0
        %v2372 = vand.u32 %v1753, 4294901760
        %v2373 = vsub.f32 %v1753, %v2372
        %v2374 = vand.u32 %v2373, 4294901760
        %2375 = vmatmul.mubr.f32.gmra.mrb[0].mxu0 %v2374
        %v2376 = vpop.f32.mrb[0].mxu0
        %v2377 = vadd.f32 %v2219, %v2376
        %v2378 = vpop.f32.mrb[0].mxu0
        %2379 = vmatprep.mubr.f32.mxu0 0.0
        %v2380 = vand.u32 %v1756, 4294901760
        %v2381 = vsub.f32 %v1756, %v2380
        %v2382 = vand.u32 %v2381, 4294901760
        %2383 = vmatmul.mubr.f32.gmra.mrb[0].mxu0 %v2382
        %v2384 = vpop.f32.mrb[0].mxu0
        %v2385 = vadd.f32 %v2226, %v2384
        %v2386 = vpop.f32.mrb[0].mxu0
        %2387 = vmatprep.mubr.f32.mxu0 0.0
        %v2388 = vand.u32 %v1759, 4294901760
        %v2389 = vsub.f32 %v1759, %v2388
        %v2390 = vand.u32 %v2389, 4294901760
        %2391 = vmatmul.mubr.f32.gmra.mrb[0].mxu0 %v2390
        %v2392 = vpop.f32.mrb[0].mxu0
        %v2393 = vadd.f32 %v2233, %v2392
        %v2394 = vpop.f32.mrb[0].mxu0
        %2395 = vmatprep.mubr.f32.mxu0 0.0
        %v2396 = vand.u32 %v1762, 4294901760
        %v2397 = vsub.f32 %v1762, %v2396
        %v2398 = vand.u32 %v2397, 4294901760
        %2399 = vmatmul.mubr.f32.gmra.mrb[0].mxu0 %v2398
        %v2400 = vpop.f32.mrb[0].mxu0
        %v2401 = vadd.f32 %v2240, %v2400
        %v2402 = vpop.f32.mrb[0].mxu0
        %2403 = vmatprep.mubr.f32.mxu0 0.0
        %v2404 = vand.u32 %v1765, 4294901760
        %v2405 = vsub.f32 %v1765, %v2404
        %v2406 = vand.u32 %v2405, 4294901760
        %2407 = vmatmul.mubr.f32.gmra.mrb[0].mxu0 %v2406
        %v2408 = vpop.f32.mrb[0].mxu0
        %v2409 = vadd.f32 %v2247, %v2408
        %v2410 = vpop.f32.mrb[0].mxu0
        %2411 = vmatprep.mubr.f32.mxu0 0.0
        %v2412 = vand.u32 %v1768, 4294901760
        %v2413 = vsub.f32 %v1768, %v2412
        %v2414 = vand.u32 %v2413, 4294901760
        %2415 = vmatmul.mubr.f32.gmra.mrb[0].mxu0 %v2414
        %v2416 = vpop.f32.mrb[0].mxu0
        %v2417 = vadd.f32 %v2254, %v2416
        %v2418 = vpop.f32.mrb[0].mxu0
        %2419 = vdwg.mxu0
        %2420 = vmatprep.subr.mxu0 0.0
        %v2421 = vand.u32 %v1732, 4294901760
        %v2422 = vsub.f32 %v1732, %v2421
        %v2423 = vand.u32 %v2422, 4294901760
        %2424 = vmatpush1.msra.mxu0 %v2423
        %2425 = vmatprep.subr.mxu0 0.0
        %v2426 = vand.u32 %v1733, 4294901760
        %v2427 = vsub.f32 %v1733, %v2426
        %v2428 = vand.u32 %v2427, 4294901760
        %2429 = vmatpush1.msra.mxu0 %v2428
        %2430 = vmatprep.subr.mxu0 0.0
        %2431 = vmatpush1.msra.mxu0 0.0
        %2432 = vmatprep.subr.mxu0 0.0
        %2433 = vmatpush1.msra.mxu0 0.0
        %2434 = vmatprep.subr.mxu0 0.0
        %2435 = vmatpush1.msra.mxu0 0.0
        %2436 = vmatprep.subr.mxu0 0.0
        %2437 = vmatpush1.msra.mxu0 0.0
        %2438 = vmatprep.subr.mxu0 0.0
        %2439 = vmatpush1.msra.mxu0 0.0
        %2440 = vmatprep.subr.mxu0 0.0
        %2441 = vmatpush1.msra.mxu0 0.0
        %2442 = vmatprep.subr.mxu0 0.0
        %2443 = vmatpush1.msra.mxu0 0.0
        %2444 = vmatprep.subr.mxu0 0.0
        %2445 = vmatpush1.msra.mxu0 0.0
        %2446 = vmatprep.subr.mxu0 0.0
        %2447 = vmatpush1.msra.mxu0 0.0
        %2448 = vmatprep.subr.mxu0 0.0
        %2449 = vmatpush1.msra.mxu0 0.0
        %2450 = vmatprep.subr.mxu0 0.0
        %2451 = vmatpush1.msra.mxu0 0.0
        %2452 = vmatprep.subr.mxu0 0.0
        %2453 = vmatpush1.msra.mxu0 0.0
        %2454 = vmatprep.subr.mxu0 0.0
        %2455 = vmatpush1.msra.mxu0 0.0
        %2456 = vmatprep.subr.mxu0 0.0
        %2457 = vmatpush1.msra.mxu0 0.0
        %2458 = vmatprep.subr.mxu0 0.0
        %2459 = vmatpush1.msra.mxu0 0.0
        %2460 = vmatprep.subr.mxu0 0.0
        %2461 = vmatpush1.msra.mxu0 0.0
        %2462 = vmatprep.subr.mxu0 0.0
        %2463 = vmatpush1.msra.mxu0 0.0
        %2464 = vmatprep.subr.mxu0 0.0
        %2465 = vmatpush1.msra.mxu0 0.0
        %2466 = vmatprep.subr.mxu0 0.0
        %2467 = vmatpush1.msra.mxu0 0.0
        %2468 = vmatprep.subr.mxu0 0.0
        %2469 = vmatpush1.msra.mxu0 0.0
        %2470 = vmatprep.subr.mxu0 0.0
        %2471 = vmatpush1.msra.mxu0 0.0
        %2472 = vmatprep.subr.mxu0 0.0
        %2473 = vmatpush1.msra.mxu0 0.0
        %2474 = vmatprep.subr.mxu0 0.0
        %2475 = vmatpush1.msra.mxu0 0.0
        %2476 = vmatprep.subr.mxu0 0.0
        %2477 = vmatpush1.msra.mxu0 0.0
        %2478 = vmatprep.subr.mxu0 0.0
        %2479 = vmatpush1.msra.mxu0 0.0
        %2480 = vmatprep.subr.mxu0 0.0
        %2481 = vmatpush1.msra.mxu0 0.0
        %2482 = vmatprep.subr.mxu0 0.0
        %2483 = vmatpush1.msra.mxu0 0.0
        %2484 = vmatprep.subr.mxu0 0.0
        %2485 = vmatpush1.msra.mxu0 0.0
        %2486 = vmatprep.subr.mxu0 0.0
        %2487 = vmatpush1.msra.mxu0 0.0
        %2488 = vmatprep.subr.mxu0 0.0
        %2489 = vmatpush1.msra.mxu0 0.0
        %2490 = vmatprep.mubr.f32.mxu0 0.0
        %v2491 = vand.u32 %v1735, 4294901760
        %2492 = vmatmul.mubr.f32.gmra.mrb[0].mxu0 %v2491
        %v2493 = vpop.f32.mrb[0].mxu0
        %v2494 = vadd.f32 %v2329, %v2493
        %v2495 = vpop.f32.mrb[0].mxu0
        %2496 = vmatprep.mubr.f32.mxu0 0.0
        %v2497 = vand.u32 %v1738, 4294901760
        %2498 = vmatmul.mubr.f32.gmra.mrb[0].mxu0 %v2497
        %v2499 = vpop.f32.mrb[0].mxu0
        %v2500 = vadd.f32 %v2337, %v2499
        %v2501 = vpop.f32.mrb[0].mxu0
        %2502 = vmatprep.mubr.f32.mxu0 0.0
        %v2503 = vand.u32 %v1741, 4294901760
        %2504 = vmatmul.mubr.f32.gmra.mrb[0].mxu0 %v2503
        %v2505 = vpop.f32.mrb[0].mxu0
        %v2506 = vadd.f32 %v2345, %v2505
        %v2507 = vpop.f32.mrb[0].mxu0
        %2508 = vmatprep.mubr.f32.mxu0 0.0
        %v2509 = vand.u32 %v1744, 4294901760
        %2510 = vmatmul.mubr.f32.gmra.mrb[0].mxu0 %v2509
        %v2511 = vpop.f32.mrb[0].mxu0
        %v2512 = vadd.f32 %v2353, %v2511
        %v2513 = vpop.f32.mrb[0].mxu0
        %2514 = vmatprep.mubr.f32.mxu0 0.0
        %v2515 = vand.u32 %v1747, 4294901760
        %2516 = vmatmul.mubr.f32.gmra.mrb[0].mxu0 %v2515
        %v2517 = vpop.f32.mrb[0].mxu0
        %v2518 = vadd.f32 %v2361, %v2517
        %v2519 = vpop.f32.mrb[0].mxu0
        %2520 = vmatprep.mubr.f32.mxu0 0.0
        %v2521 = vand.u32 %v1750, 4294901760
        %2522 = vmatmul.mubr.f32.gmra.mrb[0].mxu0 %v2521
        %v2523 = vpop.f32.mrb[0].mxu0
        %v2524 = vadd.f32 %v2369, %v2523
        %v2525 = vpop.f32.mrb[0].mxu0
        %2526 = vmatprep.mubr.f32.mxu0 0.0
        %v2527 = vand.u32 %v1753, 4294901760
        %2528 = vmatmul.mubr.f32.gmra.mrb[0].mxu0 %v2527
        %v2529 = vpop.f32.mrb[0].mxu0
        %v2530 = vadd.f32 %v2377, %v2529
        %v2531 = vpop.f32.mrb[0].mxu0
        %2532 = vmatprep.mubr.f32.mxu0 0.0
        %v2533 = vand.u32 %v1756, 4294901760
        %2534 = vmatmul.mubr.f32.gmra.mrb[0].mxu0 %v2533
        %v2535 = vpop.f32.mrb[0].mxu0
        %v2536 = vadd.f32 %v2385, %v2535
        %v2537 = vpop.f32.mrb[0].mxu0
        %2538 = vmatprep.mubr.f32.mxu0 0.0
        %v2539 = vand.u32 %v1759, 4294901760
        %2540 = vmatmul.mubr.f32.gmra.mrb[0].mxu0 %v2539
        %v2541 = vpop.f32.mrb[0].mxu0
        %v2542 = vadd.f32 %v2393, %v2541
        %v2543 = vpop.f32.mrb[0].mxu0
        %2544 = vmatprep.mubr.f32.mxu0 0.0
        %v2545 = vand.u32 %v1762, 4294901760
        %2546 = vmatmul.mubr.f32.gmra.mrb[0].mxu0 %v2545
        %v2547 = vpop.f32.mrb[0].mxu0
        %v2548 = vadd.f32 %v2401, %v2547
        %v2549 = vpop.f32.mrb[0].mxu0
        %2550 = vmatprep.mubr.f32.mxu0 0.0
        %v2551 = vand.u32 %v1765, 4294901760
        %2552 = vmatmul.mubr.f32.gmra.mrb[0].mxu0 %v2551
        %v2553 = vpop.f32.mrb[0].mxu0
        %v2554 = vadd.f32 %v2409, %v2553
        %v2555 = vpop.f32.mrb[0].mxu0
        %2556 = vmatprep.mubr.f32.mxu0 0.0
        %v2557 = vand.u32 %v1768, 4294901760
        %2558 = vmatmul.mubr.f32.gmra.mrb[0].mxu0 %v2557
        %v2559 = vpop.f32.mrb[0].mxu0
        %v2560 = vadd.f32 %v2417, %v2559
        %v2561 = vpop.f32.mrb[0].mxu0
        %2562 = vdwg.mxu0
        %2563 = vmatprep.subr.mxu0 0.0
        %v2564 = vand.u32 %v1732, 4294901760
        %2565 = vmatpush1.msra.mxu0 %v2564
        %2566 = vmatprep.subr.mxu0 0.0
        %v2567 = vand.u32 %v1733, 4294901760
        %2568 = vmatpush1.msra.mxu0 %v2567
        %2569 = vmatprep.subr.mxu0 0.0
        %2570 = vmatpush1.msra.mxu0 0.0
        %2571 = vmatprep.subr.mxu0 0.0
        %2572 = vmatpush1.msra.mxu0 0.0
        %2573 = vmatprep.subr.mxu0 0.0
        %2574 = vmatpush1.msra.mxu0 0.0
        %2575 = vmatprep.subr.mxu0 0.0
        %2576 = vmatpush1.msra.mxu0 0.0
        %2577 = vmatprep.subr.mxu0 0.0
        %2578 = vmatpush1.msra.mxu0 0.0
        %2579 = vmatprep.subr.mxu0 0.0
        %2580 = vmatpush1.msra.mxu0 0.0
        %2581 = vmatprep.subr.mxu0 0.0
        %2582 = vmatpush1.msra.mxu0 0.0
        %2583 = vmatprep.subr.mxu0 0.0
        %2584 = vmatpush1.msra.mxu0 0.0
        %2585 = vmatprep.subr.mxu0 0.0
        %2586 = vmatpush1.msra.mxu0 0.0
        %2587 = vmatprep.subr.mxu0 0.0
        %2588 = vmatpush1.msra.mxu0 0.0
        %2589 = vmatprep.subr.mxu0 0.0
        %2590 = vmatpush1.msra.mxu0 0.0
        %2591 = vmatprep.subr.mxu0 0.0
        %2592 = vmatpush1.msra.mxu0 0.0
        %2593 = vmatprep.subr.mxu0 0.0
        %2594 = vmatpush1.msra.mxu0 0.0
        %2595 = vmatprep.subr.mxu0 0.0
        %2596 = vmatpush1.msra.mxu0 0.0
        %2597 = vmatprep.subr.mxu0 0.0
        %2598 = vmatpush1.msra.mxu0 0.0
        %2599 = vmatprep.subr.mxu0 0.0
        %2600 = vmatpush1.msra.mxu0 0.0
        %2601 = vmatprep.subr.mxu0 0.0
        %2602 = vmatpush1.msra.mxu0 0.0
        %2603 = vmatprep.subr.mxu0 0.0
        %2604 = vmatpush1.msra.mxu0 0.0
        %2605 = vmatprep.subr.mxu0 0.0
        %2606 = vmatpush1.msra.mxu0 0.0
        %2607 = vmatprep.subr.mxu0 0.0
        %2608 = vmatpush1.msra.mxu0 0.0
        %2609 = vmatprep.subr.mxu0 0.0
        %2610 = vmatpush1.msra.mxu0 0.0
        %2611 = vmatprep.subr.mxu0 0.0
        %2612 = vmatpush1.msra.mxu0 0.0
        %2613 = vmatprep.subr.mxu0 0.0
        %2614 = vmatpush1.msra.mxu0 0.0
        %2615 = vmatprep.subr.mxu0 0.0
        %2616 = vmatpush1.msra.mxu0 0.0
        %2617 = vmatprep.subr.mxu0 0.0
        %2618 = vmatpush1.msra.mxu0 0.0
        %2619 = vmatprep.subr.mxu0 0.0
        %2620 = vmatpush1.msra.mxu0 0.0
        %2621 = vmatprep.subr.mxu0 0.0
        %2622 = vmatpush1.msra.mxu0 0.0
        %2623 = vmatprep.subr.mxu0 0.0
        %2624 = vmatpush1.msra.mxu0 0.0
        %2625 = vmatprep.subr.mxu0 0.0
        %2626 = vmatpush1.msra.mxu0 0.0
        %2627 = vmatprep.subr.mxu0 0.0
        %2628 = vmatpush1.msra.mxu0 0.0
        %2629 = vmatprep.mubr.f32.mxu0 0.0
        %v2630 = vand.u32 %v1735, 4294901760
        %2631 = vmatmul.mubr.f32.gmra.mrb[0].mxu0 %v2630
        %v2632 = vpop.f32.mrb[0].mxu0
        %v2633 = vadd.f32 %v2494, %v2632
        %v2634 = vpop.f32.mrb[0].mxu0
        %2635 = vmatprep.mubr.f32.mxu0 0.0
        %v2636 = vand.u32 %v1738, 4294901760
        %2637 = vmatmul.mubr.f32.gmra.mrb[0].mxu0 %v2636
        %v2638 = vpop.f32.mrb[0].mxu0
        %v2639 = vadd.f32 %v2500, %v2638
        %v2640 = vpop.f32.mrb[0].mxu0
        %2641 = vmatprep.mubr.f32.mxu0 0.0
        %v2642 = vand.u32 %v1741, 4294901760
        %2643 = vmatmul.mubr.f32.gmra.mrb[0].mxu0 %v2642
        %v2644 = vpop.f32.mrb[0].mxu0
        %v2645 = vadd.f32 %v2506, %v2644
        %v2646 = vpop.f32.mrb[0].mxu0
        %2647 = vmatprep.mubr.f32.mxu0 0.0
        %v2648 = vand.u32 %v1744, 4294901760
        %2649 = vmatmul.mubr.f32.gmra.mrb[0].mxu0 %v2648
        %v2650 = vpop.f32.mrb[0].mxu0
        %v2651 = vadd.f32 %v2512, %v2650
        %v2652 = vpop.f32.mrb[0].mxu0
        %2653 = vmatprep.mubr.f32.mxu0 0.0
        %v2654 = vand.u32 %v1747, 4294901760
        %2655 = vmatmul.mubr.f32.gmra.mrb[0].mxu0 %v2654
        %v2656 = vpop.f32.mrb[0].mxu0
        %v2657 = vadd.f32 %v2518, %v2656
        %v2658 = vpop.f32.mrb[0].mxu0
        %2659 = vmatprep.mubr.f32.mxu0 0.0
        %v2660 = vand.u32 %v1750, 4294901760
        %2661 = vmatmul.mubr.f32.gmra.mrb[0].mxu0 %v2660
        %v2662 = vpop.f32.mrb[0].mxu0
        %v2663 = vadd.f32 %v2524, %v2662
        %v2664 = vpop.f32.mrb[0].mxu0
        %2665 = vmatprep.mubr.f32.mxu0 0.0
        %v2666 = vand.u32 %v1753, 4294901760
        %2667 = vmatmul.mubr.f32.gmra.mrb[0].mxu0 %v2666
        %v2668 = vpop.f32.mrb[0].mxu0
        %v2669 = vadd.f32 %v2530, %v2668
        %v2670 = vpop.f32.mrb[0].mxu0
        %2671 = vmatprep.mubr.f32.mxu0 0.0
        %v2672 = vand.u32 %v1756, 4294901760
        %2673 = vmatmul.mubr.f32.gmra.mrb[0].mxu0 %v2672
        %v2674 = vpop.f32.mrb[0].mxu0
        %v2675 = vadd.f32 %v2536, %v2674
        %v2676 = vpop.f32.mrb[0].mxu0
        %2677 = vmatprep.mubr.f32.mxu0 0.0
        %v2678 = vand.u32 %v1759, 4294901760
        %2679 = vmatmul.mubr.f32.gmra.mrb[0].mxu0 %v2678
        %v2680 = vpop.f32.mrb[0].mxu0
        %v2681 = vadd.f32 %v2542, %v2680
        %v2682 = vpop.f32.mrb[0].mxu0
        %2683 = vmatprep.mubr.f32.mxu0 0.0
        %v2684 = vand.u32 %v1762, 4294901760
        %2685 = vmatmul.mubr.f32.gmra.mrb[0].mxu0 %v2684
        %v2686 = vpop.f32.mrb[0].mxu0
        %v2687 = vadd.f32 %v2548, %v2686
        %v2688 = vpop.f32.mrb[0].mxu0
        %2689 = vmatprep.mubr.f32.mxu0 0.0
        %v2690 = vand.u32 %v1765, 4294901760
        %2691 = vmatmul.mubr.f32.gmra.mrb[0].mxu0 %v2690
        %v2692 = vpop.f32.mrb[0].mxu0
        %v2693 = vadd.f32 %v2554, %v2692
        %v2694 = vpop.f32.mrb[0].mxu0
        %2695 = vmatprep.mubr.f32.mxu0 0.0
        %v2696 = vand.u32 %v1768, 4294901760
        %2697 = vmatmul.mubr.f32.gmra.mrb[0].mxu0 %v2696
        %v2698 = vpop.f32.mrb[0].mxu0
        %v2699 = vadd.f32 %v2560, %v2698
        %v2700 = vpop.f32.mrb[0].mxu0
        %2701 = vdwg.mxu0
        %v2702 = vmul.f32 %v1663, %v2633
        %v2703 = vmul.f32 %v1669, %v2639
        %v2704 = vmul.f32 %v1675, %v2645
        %v2705 = vmul.f32 %v1681, %v2651
        %v2706 = vmul.f32 %v1687, %v2657
        %v2707 = vmul.f32 %v1693, %v2663
        %v2708 = vmul.f32 %v1699, %v2669
        %v2709 = vmul.f32 %v1705, %v2675
        %v2710 = vmul.f32 %v1711, %v2681
        %v2711 = vmul.f32 %v1717, %v2687
        %v2712 = vmul.f32 %v1723, %v2693
        %v2713 = vmul.f32 %v1729, %v2699
        %v2714 = vsel %vm734, %v2702, 0.0
        %v2715 = vsel %vm734, %v2703, 0.0
        %v2716 = vadd.f32 %v2714, %v2715
        %v2717 = vsel %vm734, %v2704, 0.0
        %v2718 = vadd.f32 %v2716, %v2717
        %v2719 = vsel %vm734, %v2705, 0.0
        %v2720 = vsel %vm734, %v2706, 0.0
        %v2721 = vadd.f32 %v2719, %v2720
        %v2722 = vsel %vm734, %v2707, 0.0
        %v2723 = vadd.f32 %v2721, %v2722
        %v2724 = vsel %vm734, %v2708, 0.0
        %v2725 = vsel %vm734, %v2709, 0.0
        %v2726 = vadd.f32 %v2724, %v2725
        %v2727 = vsel %vm734, %v2710, 0.0
        %v2728 = vadd.f32 %v2726, %v2727
        %v2729 = vsel %vm734, %v2711, 0.0
        %v2730 = vsel %vm734, %v2712, 0.0
        %v2731 = vadd.f32 %v2729, %v2730
        %v2732 = vsel %vm734, %v2713, 0.0
        %v2733 = vadd.f32 %v2731, %v2732
        %v2734 = vmul.f32 %v2633, %v2633
        %v2735 = vmul.f32 %v2639, %v2639
        %v2736 = vmul.f32 %v2645, %v2645
        %v2737 = vmul.f32 %v2651, %v2651
        %v2738 = vmul.f32 %v2657, %v2657
        %v2739 = vmul.f32 %v2663, %v2663
        %v2740 = vmul.f32 %v2669, %v2669
        %v2741 = vmul.f32 %v2675, %v2675
        %v2742 = vmul.f32 %v2681, %v2681
        %v2743 = vmul.f32 %v2687, %v2687
        %v2744 = vmul.f32 %v2693, %v2693
        %v2745 = vmul.f32 %v2699, %v2699
        %v2746 = vsel %vm734, %v2734, 0.0
        %v2747 = vsel %vm734, %v2735, 0.0
        %v2748 = vadd.f32 %v2746, %v2747
        %v2749 = vsel %vm734, %v2736, 0.0
        %v2750 = vadd.f32 %v2748, %v2749
        %v2751 = vsel %vm734, %v2737, 0.0
        %v2752 = vsel %vm734, %v2738, 0.0
        %v2753 = vadd.f32 %v2751, %v2752
        %v2754 = vsel %vm734, %v2739, 0.0
        %v2755 = vadd.f32 %v2753, %v2754
        %v2756 = vsel %vm734, %v2740, 0.0
        %v2757 = vsel %vm734, %v2741, 0.0
        %v2758 = vadd.f32 %v2756, %v2757
        %v2759 = vsel %vm734, %v2742, 0.0
        %v2760 = vadd.f32 %v2758, %v2759
        %v2761 = vsel %vm734, %v2743, 0.0
        %v2762 = vsel %vm734, %v2744, 0.0
        %v2763 = vadd.f32 %v2761, %v2762
        %v2764 = vsel %vm734, %v2745, 0.0
        %v2765 = vadd.f32 %v2763, %v2764
        %v2766 = vadd.f32 %v2750, 1e-06
        %v2767 = vadd.f32 %v2755, 1e-06
        %v2768 = vadd.f32 %v2760, 1e-06
        %v2769 = vadd.f32 %v2765, 1e-06
        %v2770 = vrcp.pop %v2766
        %v2771 = vmul.f32 %v2718, %v2770
        %v2772 = vrcp.pop %v2767
        %v2773 = vmul.f32 %v2723, %v2772
        %v2774 = vrcp.pop %v2768
        %v2775 = vmul.f32 %v2728, %v2774
        %v2776 = vrcp.pop %v2769
        %v2777 = vmul.f32 %v2733, %v2776
        %vm2778 = vcmp.ge.f32.partialorder %v2718, 0.0
        %vm2779 = vcmp.ge.f32.partialorder %v2723, 0.0
        %vm2780 = vcmp.ge.f32.partialorder %v2728, 0.0
        %vm2781 = vcmp.ge.f32.partialorder %v2733, 0.0
        %v2782 = vsel %vm2778, 0.0, %v2771
        %v2783 = vsel %vm2779, 0.0, %v2773
        %v2784 = vsel %vm2780, 0.0, %v2775
        %v2785 = vsel %vm2781, 0.0, %v2777
        %v2786 = vmul.f32 %v2782, 0.8
        %v2787 = vmul.f32 %v2783, 0.8
        %v2788 = vmul.f32 %v2784, 0.8
        %v2789 = vmul.f32 %v2785, 0.8
        %v2790 = vmul.f32 %v2786, %v2633
        %v2791 = vmul.f32 %v2786, %v2639
        %v2792 = vmul.f32 %v2786, %v2645
        %v2793 = vmul.f32 %v2787, %v2651
        %v2794 = vmul.f32 %v2787, %v2657
        %v2795 = vmul.f32 %v2787, %v2663
        %v2796 = vmul.f32 %v2788, %v2669
        %v2797 = vmul.f32 %v2788, %v2675
        %v2798 = vmul.f32 %v2788, %v2681
        %v2799 = vmul.f32 %v2789, %v2687
        %v2800 = vmul.f32 %v2789, %v2693
        %v2801 = vmul.f32 %v2789, %v2699
        %v2802 = vsub.f32 %v1663, %v2790
        %v2803 = vsub.f32 %v1669, %v2791
        %v2804 = vsub.f32 %v1675, %v2792
        %v2805 = vsub.f32 %v1681, %v2793
        %v2806 = vsub.f32 %v1687, %v2794
        %v2807 = vsub.f32 %v1693, %v2795
        %v2808 = vsub.f32 %v1699, %v2796
        %v2809 = vsub.f32 %v1705, %v2797
        %v2810 = vsub.f32 %v1711, %v2798
        %v2811 = vsub.f32 %v1717, %v2799
        %v2812 = vsub.f32 %v1723, %v2800
        %v2813 = vsub.f32 %v1729, %v2801
        %2814 = vst.msk [vmem:[%s257] sm:$0xff] %vm734, %v2802
        %2815 = vst.msk [vmem:[%s257 + $0x8] sm:$0xff] %vm734, %v2803
        %2816 = vst.msk [vmem:[%s257 + $0x10] sm:$0xff] %vm734, %v2804
        %2817 = vst.msk [vmem:[%s257 + $0x18] sm:$0xff] %vm734, %v2805
        %2818 = vst.msk [vmem:[%s257 + $0x20] sm:$0xff] %vm734, %v2806
        %2819 = vst.msk [vmem:[%s257 + $0x28] sm:$0xff] %vm734, %v2807
        %2820 = vst.msk [vmem:[%s257 + $0x30] sm:$0xff] %vm734, %v2808
        %2821 = vst.msk [vmem:[%s257 + $0x38] sm:$0xff] %vm734, %v2809
        %2822 = vst.msk [vmem:[%s257 + $0x40] sm:$0xff] %vm734, %v2810
        %2823 = vst.msk [vmem:[%s257 + $0x48] sm:$0xff] %vm734, %v2811
        %2824 = vst.msk [vmem:[%s257 + $0x50] sm:$0xff] %vm734, %v2812
        %2825 = vst.msk [vmem:[%s257 + $0x58] sm:$0xff] %vm734, %v2813
        %s2826 = sand.u32 %s126, 1
        %s2827 = scalar_lea.sflag [#allocation4], %s2826
        %s2828 = sand.u32 %s126, 1
        %s2829 = smul.addr %s2828, 96
        %s2830 = scalar_lea.vmem [#allocation7], %s2829
        // Predicated region
        $region45: #{complex_linear_and_leaky_relu.1} parent=35 // pred_check
          %p2831 = pneg %p136
        $region46: #{complex_linear_and_leaky_relu.1} parent=35 // pred_check_branch
          %2833 = sbr.rel (%p2831) target = $region48
        $region47: #{complex_linear_and_leaky_relu.1} parent=35 // pred_region
          %s2834 = smul.u32 4, %s24
          %s2836 = ssub.s32 1536, 1536
          %2837 = vsyncadd %s2827, %s2836
          %s2838 = smul.addr %s2834, 3
          %s2839 = smul.addr %s2838, 128
          %s2840 = scalar_lea.hbm %s4, %s2839
          %s2841 = sshll.u32 %s2830, 4
          %s2842 = int_to_ptr.vmem [resolvable:$true] %s2841
          %2847 = dma.vmem_to_hbm [thread:$0]  %s2842, 1536, %s2840, %s2827, 128, 128, 8
        $region48: #{complex_linear_and_leaky_relu.1} parent=35 // pred_fallthru
          _
      $region36: #{complex_linear_and_leaky_relu.1} parent=5 // pred_fallthru
        _
      %p2848 = scmp.le.s32.totalorder 2, %s19
      // Predicated region
      $region49: #{complex_linear_and_leaky_relu.1} parent=5 // pred_check
        %p2849 = pneg %p2848
      $region50: #{complex_linear_and_leaky_relu.1} parent=5 // pred_check_branch
        %2851 = sbr.rel (%p2849) target = $region52
      $region51: #{complex_linear_and_leaky_relu.1} parent=5 // pred_region
        %s2852 = ssub.s32 %s19, 2
        // Predicated region
        $region53: #{complex_linear_and_leaky_relu.1} parent=51 // pred_check
          %p2853 = pneg %p142
        $region54: #{complex_linear_and_leaky_relu.1} parent=51 // pred_check_branch
          %2855 = sbr.rel (%p2853) target = $region56
        $region55: #{complex_linear_and_leaky_relu.1} parent=51 // pred_region
          %s2856 = sand.u32 %s127, 1
          %s2857 = scalar_lea.sflag [#allocation4], %s2856
          %s2858 = sand.u32 %s127, 1
          %s2859 = smul.addr %s2858, 96
          %s2860 = scalar_lea.vmem [#allocation7], %s2859
          %2861 = dma.done %s2857, 1536
        $region56: #{complex_linear_and_leaky_relu.1} parent=51 // pred_fallthru
          _
      $region52: #{complex_linear_and_leaky_relu.1} parent=5 // pred_fallthru
        _
    $region6: #{complex_linear_and_leaky_relu.1} parent=1 // loop_footer
      %s23 = sadd.s32 1, %s19
    $region7: #{complex_linear_and_leaky_relu.1} parent=1 // loop_footer_branch
      %18 = sbr.rel target = $region3
    $region8: #{complex_linear_and_leaky_relu.1} parent=1 // loop_exit
      _
    %2862 = vsyncpa [#allocation3], 1
    %s2863 = scalar_lea.sflag [#allocation3], 1
    %2864 = vsyncpa %s2863, 1
    %2865 = vsyncpa [#allocation6], 1
    %s2866 = scalar_lea.sflag [#allocation6], 1
    %2867 = vsyncpa %s2866, 1
    %2868 = vsyncpa [#allocation4], 1
    %s2869 = scalar_lea.sflag [#allocation4], 1
    %2870 = vsyncpa %s2869, 1

</llo_original>
